<compile_context>
chip_gen: v6e
topology: v6e:2x2x1
jax: 0.10.0
libtpu: 0.0.40
codegen_flags: <defaults>
</compile_context>

<pallas_src>
import functools

import jax
import jax.numpy as jnp
from jax.experimental import pallas as pl
from jax.experimental.pallas import tpu as pltpu


def _round_up(x, m):
    return ((x + m - 1) // m) * m


def _cdiv(a, b):
    return (a + b - 1) // b


# ---------------------------------------------------------------------------
# Per-chip policy
# ---------------------------------------------------------------------------
def _device_kind():
    try:
        return jax.devices()[0].device_kind.lower()
    except Exception:
        return ""


def _chip_defaults():
    kind = _device_kind()
    if "v7" in kind:
        # v7x: 64 MiB physical VMEM (32 MiB scoped default), 2 TensorCores/chip.
        return dict(batch_tile=2048, vmem_limit=40 * 1024 * 1024, fold=True,
                    want_two_steps=True)
    if ("v5e" in kind) or ("v5 lite" in kind) or ("v5lite" in kind):
        # v5e: 16 MiB scoped default (128 MiB physical); roofline knee -> modest tiles,
        # unfolded gate path (fewer MXU FLOPs), explicit VMEM limit.
        return dict(batch_tile=1024, vmem_limit=48 * 1024 * 1024, fold=False,
                    want_two_steps=False)
    # v6e and default: 128 MiB physical VMEM, HBM-bound -> big tiles, folded path.
    return dict(batch_tile=2048, vmem_limit=64 * 1024 * 1024, fold=True,
                want_two_steps=False)


# ---------------------------------------------------------------------------
# Kernel
# ---------------------------------------------------------------------------
def _fusion_kernel(a_ref, b_ref,
                   wb_ref, bb_ref,
                   w1a_ref, wx_ref, bx_ref,
                   w2_ref, b2_ref,
                   out_ref, *, fold):
    # feat_a stays f32 (it is a blend operand).  Both activations are converted to
    # bf16 here on the VPU, so the wrapper never runs a separate convert/pad pass.
    a_f32 = a_ref[...]
    a_bf16 = a_f32.astype(jnp.bfloat16)
    b_bf16 = b_ref[...].astype(jnp.bfloat16)

    # reduce_b: Linear(dim_b -> dim_a).  bf16 MXU operands, f32 accumulation.
    reduced_b = (jnp.dot(b_bf16, wb_ref[...], preferred_element_type=jnp.float32)
                 + bb_ref[...])

    # gate[0]: Linear(2*dim_a -> dim_a) on cat(a, reduced_b); the concat is split
    # into two matmuls.
    h = jnp.dot(a_bf16, w1a_ref[...], preferred_element_type=jnp.float32)
    if fold:
        # reduced_b half folded into b @ (Wb @ W1b) + (bb @ W1b + b1): breaks the serial
        # MXU dependency.  Used on v6e/v7x where the extra FLOPs are hidden under HBM.
        h = h + jnp.dot(b_bf16, wx_ref[...], preferred_element_type=jnp.float32)
    else:
        # v5e: unfolded (contract over K = dim_a instead of dim_b) -> fewer MXU FLOPs;
        # the rb -> W1b dependency is covered by pipelining >=512 rows through the MXU.
        h = h + jnp.dot(reduced_b.astype(jnp.bfloat16), wx_ref[...],
                        preferred_element_type=jnp.float32)
    h = jnp.maximum(h + bx_ref[...], 0.0)                     # gate[1]: ReLU (VPU, f32)

    # gate[2]: Linear(dim_a -> dim_a); gate[3]: Sigmoid.  exp on the EUP, divide kept
    # on the EUP slot via approx reciprocal; clamp avoids exp overflow for extreme g.
    g = (jnp.dot(h.astype(jnp.bfloat16), w2_ref[...],
                 preferred_element_type=jnp.float32) + b2_ref[...])
    g = jnp.maximum(g, -60.0)
    gate = pl.reciprocal(1.0 + jnp.exp(-g), approx=True)

    # Adaptive gated blend, rewritten as rb + gate*(a - rb): one fewer VPU multiply
    # and one fewer live (tb, dim_a) f32 temporary.
    out_ref[...] = reduced_b + gate * (a_f32 - reduced_b)


# ---------------------------------------------------------------------------
# Wrapper
# ---------------------------------------------------------------------------
def feature_fusion(feat_a, feat_b, kernel_params, *, batch_tile=None,
                   vmem_limit_bytes=None):
    """Pallas-backed FeatureFusion.forward.

    feat_a: (B, dim_a), feat_b: (B, dim_b).
    kernel_params: output of prepare_kernel_params().
    """
    B, dim_a = feat_a.shape
    B2, dim_b = feat_b.shape
    assert B == B2
    assert dim_a == kernel_params["dim_a"] and dim_b == kernel_params["dim_b"]

    fold = kernel_params["fold"]
    da_p, db_p = kernel_params["da_p"], kernel_params["db_p"]
    wb, bb, w1a, wx, bx, w2, b2 = kernel_params["tensors"]

    cfg = _chip_defaults()
    if batch_tile is None:
        batch_tile = cfg["batch_tile"]
    if vmem_limit_bytes is None:
        vmem_limit_bytes = cfg["vmem_limit"]

    # Adaptive batch tile: multiple of 16 rows (bf16 sublane packing for the in-kernel
    # cast) and chosen so padding is bounded (<16 rows) instead of up to a full tile.
    n_tiles = max(1, _cdiv(B, batch_tile))
    tb = _round_up(_cdiv(B, n_tiles), 16)
    # v7x megacore: make sure there are >= 2 grid steps so both TensorCores get work.
    if cfg["want_two_steps"] and _round_up(B, tb) // tb < 2 and tb >= 32:
        tb = _round_up(_cdiv(tb, 2), 16)
    b_p = _round_up(B, tb)
    grid = (b_p // tb,)

    # Activations stream as f32 with NO extra host-side pass when already aligned
    # (bf16 conversion happens inside the kernel); pad only if actually required.
    a = feat_a if feat_a.dtype == jnp.float32 else feat_a.astype(jnp.float32)
    b = feat_b if feat_b.dtype == jnp.float32 else feat_b.astype(jnp.float32)
    if a.shape != (b_p, da_p):
        a = jnp.pad(a, ((0, b_p - B), (0, da_p - dim_a)))
    if b.shape != (b_p, db_p):
        b = jnp.pad(b, ((0, b_p - B), (0, db_p - dim_b)))

    # Weights/biases use constant index_maps so they stay VMEM-resident across steps.
    # (pipeline_mode=pl.Buffered(1) would drop the redundant second weight buffer
    # (~1 MiB); skipped for cross-version compatibility — headroom is budgeted below.)
    def resident(shape):
        return pl.BlockSpec(shape, lambda i: (0, 0))

    kx = db_p if fold else da_p
    in_specs = [
        pl.BlockSpec((tb, da_p), lambda i: (i, 0)),   # feat_a tile (f32)
        pl.BlockSpec((tb, db_p), lambda i: (i, 0)),   # feat_b tile (f32)
        resident((db_p, da_p)),                       # Wb            (bf16)
        resident((1, da_p)),                          # bb            (f32)
        resident((da_p, da_p)),                       # W1a           (bf16)
        resident((kx, da_p)),                         # Wfold or W1b  (bf16)
        resident((1, da_p)),                          # bfold or b1   (f32)
        resident((da_p, da_p)),                       # W2            (bf16)
        resident((1, da_p)),                          # b2            (f32)
    ]
    out_specs = pl.BlockSpec((tb, da_p), lambda i: (i, 0))

    # Advisory cost estimate for XLA scheduling around the custom call.
    flops = 2 * b_p * da_p * (db_p + da_p + kx + da_p)
    transcendentals = b_p * da_p  # sigmoid
    bytes_accessed = (b_p * da_p * 4 + b_p * db_p * 4 + b_p * da_p * 4
                      + (db_p * da_p + da_p * da_p + kx * da_p + da_p * da_p) * 2
                      + 3 * da_p * 4)

    out = pl.pallas_call(
        functools.partial(_fusion_kernel, fold=fold),
        out_shape=jax.ShapeDtypeStruct((b_p, da_p), jnp.float32),
        grid=grid,
        in_specs=in_specs,
        out_specs=out_specs,
        compiler_params=pltpu.CompilerParams(
            dimension_semantics=("parallel",),       # v7x: shard batch tiles over 2 TCs
            vmem_limit_bytes=vmem_limit_bytes,       # explicit budget per chip class
        ),
        cost_estimate=pl.CostEstimate(
            flops=flops,
            transcendentals=transcendentals,
            bytes_accessed=bytes_accessed,
        ),
    )(a, b, wb, bb, w1a, wx, bx, w2, b2)

    if b_p == B and da_p == dim_a:
        return out
    return out[:B, :dim_a]


# ---------------------------------------------------------------------------
# Parameters
# ---------------------------------------------------------------------------
def init_params(key, dim_a, dim_b):
    """PyTorch-style Linear init (uniform +/- 1/sqrt(fan_in)), weights stored
    transposed as [in_features, out_features], all f32."""
    ks = jax.random.split(key, 6)

    def lin(kw, kb, fan_in, fan_out):
        bound = 1.0 / jnp.sqrt(float(fan_in))
        w = jax.random.uniform(kw, (fan_in, fan_out), jnp.float32, -bound, bound)
        b = jax.random.uniform(kb, (1, fan_out), jnp.float32, -bound, bound)
        return w, b

    wb, bb = lin(ks[0], ks[1], dim_b, dim_a)          # reduce_b: Linear(dim_b, dim_a)
    w1, b1 = lin(ks[2], ks[3], 2 * dim_a, dim_a)      # gate[0]:  Linear(2*dim_a, dim_a)
    w2, b2 = lin(ks[4], ks[5], dim_a, dim_a)          # gate[2]:  Linear(dim_a, dim_a)
    return (wb, bb, w1, b1, w2, b2)


def prepare_kernel_params(params, dim_a, dim_b, *, fold=None):
    """One-time host-side prep: split (and optionally fold) gate[0], cast MXU weights
    to bf16, and lane-pad everything so the per-call wrapper never touches weights."""
    if fold is None:
        fold = _chip_defaults()["fold"]
    wb, bb, w1, b1, w2, b2 = params
    w1a, w1b = w1[:dim_a, :], w1[dim_a:, :]
    if fold:
        wx = wb @ w1b               # (dim_b, dim_a): rb @ W1b == b @ Wfold + bb @ W1b
        bx = bb @ w1b + b1          # (1, dim_a)
    else:
        wx = w1b                    # (dim_a, dim_a): kernel does rb_bf16 @ W1b
        bx = b1

    da_p, db_p = _round_up(dim_a, 128), _round_up(dim_b, 128)

    def pad2(x, rows, cols, dtype):
        x = x.astype(dtype)
        if x.shape == (rows, cols):
            return x
        return jnp.pad(x, ((0, rows - x.shape[0]), (0, cols - x.shape[1])))

    tensors = (
        pad2(wb, db_p, da_p, jnp.bfloat16),
        pad2(bb, 1, da_p, jnp.float32),
        pad2(w1a, da_p, da_p, jnp.bfloat16),
        pad2(wx, db_p if fold else da_p, da_p, jnp.bfloat16),
        pad2(bx, 1, da_p, jnp.float32),
        pad2(w2, da_p, da_p, jnp.bfloat16),
        pad2(b2, 1, da_p, jnp.float32),
    )
    return dict(fold=fold, tensors=tensors, dim_a=dim_a, dim_b=dim_b,
                da_p=da_p, db_p=db_p)


def _reference(feat_a, feat_b, params):
    """Plain-JAX f32 reference of the PyTorch forward, for verification."""
    wb, bb, w1, b1, w2, b2 = params
    a = feat_a.astype(jnp.float32)
    b = feat_b.astype(jnp.float32)
    rb = b @ wb + bb
    h = jnp.maximum(jnp.concatenate([a, rb], axis=1) @ w1 + b1, 0.0)
    gate = jax.nn.sigmoid(h @ w2 + b2)
    return gate * a + (1.0 - gate) * rb


# ---------------------------------------------------------------------------
if __name__ == "__main__":
    # Module-default feature dims, small batch.
    B, DIM_A, DIM_B = 16, 256, 512

    key = jax.random.PRNGKey(0)
    k_a, k_b, k_p = jax.random.split(key, 3)

    feat_a = jax.random.normal(k_a, (B, DIM_A), jnp.float32)
    feat_b = jax.random.normal(k_b, (B, DIM_B), jnp.float32)

    params = init_params(k_p, DIM_A, DIM_B)
    ref = _reference(feat_a, feat_b, params)

    # Exercise both gate-path variants (folded: v6e/v7x default; unfolded: v5e default).
    for fold in (True, False):
        kparams = prepare_kernel_params(params, DIM_A, DIM_B, fold=fold)
        out = jax.block_until_ready(feature_fusion(feat_a, feat_b, kparams))
        assert out.shape == (B, DIM_A)
        # bf16 matmul operands (+ host-folded Wb@W1b when fold=True) => relaxed tolerance.
        assert jnp.allclose(out, ref, atol=2e-2, rtol=2e-2), f"mismatch (fold={fold})"

    print("KERNEL_OK")
</pallas_src>

<mosaic_0001>
module attributes {stable_mosaic.version = 11 : i64} {
  func.func @_fusion_kernel(%arg0: i32, %arg1: memref<16x256xf32, #tpu.memory_space<vmem>>, %arg2: memref<16x512xf32, #tpu.memory_space<vmem>>, %arg3: memref<512x256xbf16, #tpu.memory_space<vmem>>, %arg4: memref<1x256xf32, #tpu.memory_space<vmem>>, %arg5: memref<256x256xbf16, #tpu.memory_space<vmem>>, %arg6: memref<512x256xbf16, #tpu.memory_space<vmem>>, %arg7: memref<1x256xf32, #tpu.memory_space<vmem>>, %arg8: memref<256x256xbf16, #tpu.memory_space<vmem>>, %arg9: memref<1x256xf32, #tpu.memory_space<vmem>>, %arg10: memref<16x256xf32, #tpu.memory_space<vmem>>) attributes {dimension_semantics = [#tpu.dimension_semantics<parallel>], iteration_bounds = array<i64: 1>, scalar_prefetch = 0 : i64, scratch_operands = 0 : i64, tpu.core_type = #tpu.core_type<tc>, window_params = [{transform_indices = @transform_0, window_bounds = array<i64: 16, 256>}, {transform_indices = @transform_1, window_bounds = array<i64: 16, 512>}, {pipeline_mode = #tpu.pipeline_mode<synchronous>, transform_indices = @transform_2, window_bounds = array<i64: 512, 256>}, {pipeline_mode = #tpu.pipeline_mode<synchronous>, transform_indices = @transform_3, window_bounds = array<i64: 1, 256>}, {pipeline_mode = #tpu.pipeline_mode<synchronous>, transform_indices = @transform_4, window_bounds = array<i64: 256, 256>}, {pipeline_mode = #tpu.pipeline_mode<synchronous>, transform_indices = @transform_5, window_bounds = array<i64: 512, 256>}, {pipeline_mode = #tpu.pipeline_mode<synchronous>, transform_indices = @transform_6, window_bounds = array<i64: 1, 256>}, {pipeline_mode = #tpu.pipeline_mode<synchronous>, transform_indices = @transform_7, window_bounds = array<i64: 256, 256>}, {pipeline_mode = #tpu.pipeline_mode<synchronous>, transform_indices = @transform_8, window_bounds = array<i64: 1, 256>}, {transform_indices = @transform_9, window_bounds = array<i64: 16, 256>}]} {
    %c0 = arith.constant 0 : index
    %c0_0 = arith.constant 0 : index
    %0 = vector.load %arg1[%c0, %c0_0] : memref<16x256xf32, #tpu.memory_space<vmem>>, vector<16x256xf32>
    %1 = arith.truncf %0 : vector<16x256xf32> to vector<16x256xbf16>
    %c0_1 = arith.constant 0 : index
    %c0_2 = arith.constant 0 : index
    %2 = vector.load %arg2[%c0_1, %c0_2] : memref<16x512xf32, #tpu.memory_space<vmem>>, vector<16x512xf32>
    %3 = arith.truncf %2 : vector<16x512xf32> to vector<16x512xbf16>
    %c0_3 = arith.constant 0 : index
    %c0_4 = arith.constant 0 : index
    %4 = vector.load %arg3[%c0_3, %c0_4] : memref<512x256xbf16, #tpu.memory_space<vmem>>, vector<512x256xbf16>
    %cst = arith.constant dense<0.000000e+00> : vector<16x256xf32>
    %5 = tpu.matmul %3, %4, %cst {dimension_numbers = #tpu.dot_dimension_numbers<[1], [0], [0], [1], [0, 0, 1, 1], [], []>} : vector<16x512xbf16>, vector<512x256xbf16>, vector<16x256xf32> -> vector<16x256xf32>
    %c0_5 = arith.constant 0 : index
    %c0_6 = arith.constant 0 : index
    %6 = vector.load %arg4[%c0_5, %c0_6] : memref<1x256xf32, #tpu.memory_space<vmem>>, vector<1x256xf32>
    %7 = vector.broadcast %6 : vector<1x256xf32> to vector<16x256xf32>
    %8 = arith.addf %5, %7 : vector<16x256xf32>
    %c0_7 = arith.constant 0 : index
    %c0_8 = arith.constant 0 : index
    %9 = vector.load %arg5[%c0_7, %c0_8] : memref<256x256xbf16, #tpu.memory_space<vmem>>, vector<256x256xbf16>
    %cst_9 = arith.constant dense<0.000000e+00> : vector<16x256xf32>
    %10 = tpu.matmul %1, %9, %cst_9 {dimension_numbers = #tpu.dot_dimension_numbers<[1], [0], [0], [1], [0, 0, 1, 1], [], []>} : vector<16x256xbf16>, vector<256x256xbf16>, vector<16x256xf32> -> vector<16x256xf32>
    %c0_10 = arith.constant 0 : index
    %c0_11 = arith.constant 0 : index
    %11 = vector.load %arg6[%c0_10, %c0_11] : memref<512x256xbf16, #tpu.memory_space<vmem>>, vector<512x256xbf16>
    %cst_12 = arith.constant dense<0.000000e+00> : vector<16x256xf32>
    %12 = tpu.matmul %3, %11, %cst_12 {dimension_numbers = #tpu.dot_dimension_numbers<[1], [0], [0], [1], [0, 0, 1, 1], [], []>} : vector<16x512xbf16>, vector<512x256xbf16>, vector<16x256xf32> -> vector<16x256xf32>
    %13 = arith.addf %10, %12 : vector<16x256xf32>
    %c0_13 = arith.constant 0 : index
    %c0_14 = arith.constant 0 : index
    %14 = vector.load %arg7[%c0_13, %c0_14] : memref<1x256xf32, #tpu.memory_space<vmem>>, vector<1x256xf32>
    %15 = vector.broadcast %14 : vector<1x256xf32> to vector<16x256xf32>
    %16 = arith.addf %13, %15 : vector<16x256xf32>
    %cst_15 = arith.constant 0.000000e+00 : f32
    %17 = vector.broadcast %cst_15 : f32 to vector<16x256xf32>
    %18 = arith.maximumf %16, %17 : vector<16x256xf32>
    %19 = arith.truncf %18 : vector<16x256xf32> to vector<16x256xbf16>
    %c0_16 = arith.constant 0 : index
    %c0_17 = arith.constant 0 : index
    %20 = vector.load %arg8[%c0_16, %c0_17] : memref<256x256xbf16, #tpu.memory_space<vmem>>, vector<256x256xbf16>
    %cst_18 = arith.constant dense<0.000000e+00> : vector<16x256xf32>
    %21 = tpu.matmul %19, %20, %cst_18 {dimension_numbers = #tpu.dot_dimension_numbers<[1], [0], [0], [1], [0, 0, 1, 1], [], []>} : vector<16x256xbf16>, vector<256x256xbf16>, vector<16x256xf32> -> vector<16x256xf32>
    %c0_19 = arith.constant 0 : index
    %c0_20 = arith.constant 0 : index
    %22 = vector.load %arg9[%c0_19, %c0_20] : memref<1x256xf32, #tpu.memory_space<vmem>>, vector<1x256xf32>
    %23 = vector.broadcast %22 : vector<1x256xf32> to vector<16x256xf32>
    %24 = arith.addf %21, %23 : vector<16x256xf32>
    %cst_21 = arith.constant -6.000000e+01 : f32
    %25 = vector.broadcast %cst_21 : f32 to vector<16x256xf32>
    %26 = arith.maximumf %24, %25 : vector<16x256xf32>
    %cst_22 = arith.constant 0.000000e+00 : f32
    %27 = vector.broadcast %cst_22 : f32 to vector<16x256xf32>
    %28 = arith.subf %27, %26 : vector<16x256xf32>
    %29 = math.exp %28 : vector<16x256xf32>
    %cst_23 = arith.constant 1.000000e+00 : f32
    %30 = vector.broadcast %cst_23 : f32 to vector<16x256xf32>
    %31 = arith.addf %30, %29 : vector<16x256xf32>
    %32 = tpu.reciprocal %31 {approx = true} : vector<16x256xf32> -> vector<16x256xf32>
    %33 = arith.subf %0, %8 : vector<16x256xf32>
    %34 = arith.mulf %32, %33 : vector<16x256xf32>
    %35 = arith.addf %8, %34 : vector<16x256xf32>
    %c0_24 = arith.constant 0 : index
    %c0_25 = arith.constant 0 : index
    %36 = vector.load %arg10[%c0_24, %c0_25] : memref<16x256xf32, #tpu.memory_space<vmem>>, vector<16x256xf32>
    tpu.vector_store %arg10[%c0_24, %c0_25], %35 {strides = array<i32>} : memref<16x256xf32, #tpu.memory_space<vmem>>, vector<16x256xf32>,
    return
  }
  func.func @transform_0(%arg0: i32) -> (i32, i32) {
    %c0_i32 = arith.constant 0 : i32
    %c0_i32_0 = arith.constant 0 : i32
    return %arg0, %c0_i32 : i32, i32
  }
  func.func @transform_1(%arg0: i32) -> (i32, i32) {
    %c0_i32 = arith.constant 0 : i32
    %c0_i32_0 = arith.constant 0 : i32
    return %arg0, %c0_i32 : i32, i32
  }
  func.func @transform_2(%arg0: i32) -> (i32, i32) {
    %c0_i32 = arith.constant 0 : i32
    %c0_i32_0 = arith.constant 0 : i32
    %c0_i32_1 = arith.constant 0 : i32
    return %c0_i32, %c0_i32_0 : i32, i32
  }
  func.func @transform_3(%arg0: i32) -> (i32, i32) {
    %c0_i32 = arith.constant 0 : i32
    %c0_i32_0 = arith.constant 0 : i32
    %c0_i32_1 = arith.constant 0 : i32
    return %c0_i32, %c0_i32_0 : i32, i32
  }
  func.func @transform_4(%arg0: i32) -> (i32, i32) {
    %c0_i32 = arith.constant 0 : i32
    %c0_i32_0 = arith.constant 0 : i32
    %c0_i32_1 = arith.constant 0 : i32
    return %c0_i32, %c0_i32_0 : i32, i32
  }
  func.func @transform_5(%arg0: i32) -> (i32, i32) {
    %c0_i32 = arith.constant 0 : i32
    %c0_i32_0 = arith.constant 0 : i32
    %c0_i32_1 = arith.constant 0 : i32
    return %c0_i32, %c0_i32_0 : i32, i32
  }
  func.func @transform_6(%arg0: i32) -> (i32, i32) {
    %c0_i32 = arith.constant 0 : i32
    %c0_i32_0 = arith.constant 0 : i32
    %c0_i32_1 = arith.constant 0 : i32
    return %c0_i32, %c0_i32_0 : i32, i32
  }
  func.func @transform_7(%arg0: i32) -> (i32, i32) {
    %c0_i32 = arith.constant 0 : i32
    %c0_i32_0 = arith.constant 0 : i32
    %c0_i32_1 = arith.constant 0 : i32
    return %c0_i32, %c0_i32_0 : i32, i32
  }
  func.func @transform_8(%arg0: i32) -> (i32, i32) {
    %c0_i32 = arith.constant 0 : i32
    %c0_i32_0 = arith.constant 0 : i32
    %c0_i32_1 = arith.constant 0 : i32
    return %c0_i32, %c0_i32_0 : i32, i32
  }
  func.func @transform_9(%arg0: i32) -> (i32, i32) {
    %c0_i32 = arith.constant 0 : i32
    %c0_i32_0 = arith.constant 0 : i32
    return %arg0, %c0_i32 : i32, i32
  }
}

</mosaic_0001>

<llo_original>
// kernel: tpu_custom_call.1
$region0: #{tpu_custom_call.1}
  #allocation0 [shape = 'u32[]', space=smem, size = 0x4, offset = 0x4, fixed_abs, tag = 'smem constant byte address 0x4 - core index']
  #allocation1 [shape = 'u32[144,128]{1,0:T(1,128)}', space=vmem, size = 0x12000, scoped, tag = 'internal scratch']
  %s0 = inlined_call_operand.hbm [shape: f32[16,256], index: 0, kind: input, shape index: {}]
  %s1 = inlined_call_operand.hbm [shape: f32[16,512], index: 1, kind: input, shape index: {}]
  %s2 = inlined_call_operand.hbm [shape: bf16[512,256], index: 2, kind: input, shape index: {}]
  %s3 = inlined_call_operand.vmem [shape: f32[1,256], index: 3, kind: input, shape index: {}]
  %s4 = inlined_call_operand.hbm [shape: bf16[256,256], index: 4, kind: input, shape index: {}]
  %s5 = inlined_call_operand.hbm [shape: bf16[512,256], index: 5, kind: input, shape index: {}]
  %s6 = inlined_call_operand.vmem [shape: f32[1,256], index: 6, kind: input, shape index: {}]
  %s7 = inlined_call_operand.hbm [shape: bf16[256,256], index: 7, kind: input, shape index: {}]
  %s8 = inlined_call_operand.vmem [shape: f32[1,256], index: 8, kind: input, shape index: {}]
  %s9 = inlined_call_operand.hbm [shape: f32[16,256], index: 9, kind: output, shape index: {}]
  %s10 = sld [smem:[#allocation0]]
  $region70: #{tpu_custom_call.1} parent=0
    _
  %s12 = ssub.s32 1, %s10
  %s13 = scalar_select 0, %s12, %s10
  $region1: #{tpu_custom_call.1} parent=0
    #allocation2 [shape = 'u8[16384]{0}', space=vmem, size = 0x4000, scoped, tag = 'input window, operand 0, single buffered']
    #allocation3 [shape = 's32[1]{0}', space=sflag, size = 0x4, scoped, tag = 'scoped memory for tpu_custom_call.1']
    #allocation4 [shape = 's32[1]{0}', space=sflag, size = 0x4, scoped, tag = 'scoped memory for tpu_custom_call.1']
    #allocation5 [shape = 'u8[32768]{0}', space=vmem, size = 0x8000, scoped, tag = 'input window, operand 1, single buffered']
    #allocation6 [shape = 's32[1]{0}', space=sflag, size = 0x4, scoped, tag = 'scoped memory for tpu_custom_call.1']
    #allocation7 [shape = 'u8[262144]{0}', space=vmem, size = 0x40000, scoped, tag = 'input window, operand 2, single buffered']
    #allocation8 [shape = 'u8[131072]{0}', space=vmem, size = 0x20000, scoped, tag = 'input window, operand 4, single buffered']
    #allocation9 [shape = 's32[1]{0}', space=sflag, size = 0x4, scoped, tag = 'scoped memory for tpu_custom_call.1']
    #allocation10 [shape = 'u8[262144]{0}', space=vmem, size = 0x40000, scoped, tag = 'input window, operand 5, single buffered']
    #allocation11 [shape = 'u8[131072]{0}', space=vmem, size = 0x20000, scoped, tag = 'input window, operand 7, single buffered']
    #allocation12 [shape = 's32[1]{0}', space=sflag, size = 0x4, scoped, tag = 'scoped memory for tpu_custom_call.1']
    #allocation13 [shape = 'u8[16384]{0}', space=vmem, size = 0x4000, scoped, tag = 'output window, operand 0, single buffered']
    %14 = vsyncpa [#allocation3], 0
    %15 = vsyncpa [#allocation6], 0
    %16 = vsyncpa [#allocation9], 0
    %17 = vsyncpa [#allocation12], 0
    %18 = vsyncpa [#allocation4], 0
    // Predicated region
    $region2: #{tpu_custom_call.1} parent=1 // pred_check
      _
    $region3: #{tpu_custom_call.1} parent=1 // pred_check_branch
      %20 = sbr.rel (0) target = $region5
    $region4: #{tpu_custom_call.1} parent=1 // pred_region
      %s22 = ssub.s32 512, 512
      %23 = vsyncadd [#allocation3], %s22
      %s24 = sshll.u32 [#allocation2], 4
      %s25 = int_to_ptr.vmem [resolvable:$true] %s24
      %30 = dma.hbm_to_vmem [thread:$0]  %s0, 512, %s25, [#allocation3], 256, 256, 16
    $region5: #{tpu_custom_call.1} parent=1 // pred_fallthru
      _
    // Predicated region
    $region6: #{tpu_custom_call.1} parent=1 // pred_check
      _
    $region7: #{tpu_custom_call.1} parent=1 // pred_check_branch
      %32 = sbr.rel (0) target = $region9
    $region8: #{tpu_custom_call.1} parent=1 // pred_region
      %s34 = ssub.s32 1024, 1024
      %35 = vsyncadd [#allocation6], %s34
      %s36 = sshll.u32 [#allocation5], 4
      %s37 = int_to_ptr.vmem [resolvable:$true] %s36
      %42 = dma.hbm_to_vmem [thread:$0]  %s1, 1024, %s37, [#allocation6], 512, 512, 32
    $region9: #{tpu_custom_call.1} parent=1 // pred_fallthru
      _
    // Predicated region
    $region10: #{tpu_custom_call.1} parent=1 // pred_check
      _
    $region11: #{tpu_custom_call.1} parent=1 // pred_check_branch
      %44 = sbr.rel (0) target = $region13
    $region12: #{tpu_custom_call.1} parent=1 // pred_region
      %s46 = ssub.s32 8192, 8192
      %47 = vsyncadd [#allocation6], %s46
      %s48 = sshll.u32 [#allocation7], 4
      %s49 = int_to_ptr.vmem [resolvable:$true] %s48
      %54 = dma.hbm_to_vmem [thread:$0]  %s2, 8192, %s49, [#allocation6], 128, 128, 8
    $region13: #{tpu_custom_call.1} parent=1 // pred_fallthru
      _
    // Predicated region
    $region14: #{tpu_custom_call.1} parent=1 // pred_check
      _
    $region15: #{tpu_custom_call.1} parent=1 // pred_check_branch
      %56 = sbr.rel (0) target = $region17
    $region16: #{tpu_custom_call.1} parent=1 // pred_region
      _
    $region17: #{tpu_custom_call.1} parent=1 // pred_fallthru
      _
    // Predicated region
    $region18: #{tpu_custom_call.1} parent=1 // pred_check
      _
    $region19: #{tpu_custom_call.1} parent=1 // pred_check_branch
      %58 = sbr.rel (0) target = $region21
    $region20: #{tpu_custom_call.1} parent=1 // pred_region
      %s60 = ssub.s32 4096, 4096
      %61 = vsyncadd [#allocation9], %s60
      %s62 = sshll.u32 [#allocation8], 4
      %s63 = int_to_ptr.vmem [resolvable:$true] %s62
      %68 = dma.hbm_to_vmem [thread:$0]  %s4, 4096, %s63, [#allocation9], 128, 128, 8
    $region21: #{tpu_custom_call.1} parent=1 // pred_fallthru
      _
    // Predicated region
    $region22: #{tpu_custom_call.1} parent=1 // pred_check
      _
    $region23: #{tpu_custom_call.1} parent=1 // pred_check_branch
      %70 = sbr.rel (0) target = $region25
    $region24: #{tpu_custom_call.1} parent=1 // pred_region
      %s72 = ssub.s32 8192, 8192
      %73 = vsyncadd [#allocation9], %s72
      %s74 = sshll.u32 [#allocation10], 4
      %s75 = int_to_ptr.vmem [resolvable:$true] %s74
      %80 = dma.hbm_to_vmem [thread:$0]  %s5, 8192, %s75, [#allocation9], 128, 128, 8
    $region25: #{tpu_custom_call.1} parent=1 // pred_fallthru
      _
    // Predicated region
    $region26: #{tpu_custom_call.1} parent=1 // pred_check
      _
    $region27: #{tpu_custom_call.1} parent=1 // pred_check_branch
      %82 = sbr.rel (0) target = $region29
    $region28: #{tpu_custom_call.1} parent=1 // pred_region
      _
    $region29: #{tpu_custom_call.1} parent=1 // pred_fallthru
      _
    // Predicated region
    $region30: #{tpu_custom_call.1} parent=1 // pred_check
      _
    $region31: #{tpu_custom_call.1} parent=1 // pred_check_branch
      %84 = sbr.rel (0) target = $region33
    $region32: #{tpu_custom_call.1} parent=1 // pred_region
      %s86 = ssub.s32 4096, 4096
      %87 = vsyncadd [#allocation12], %s86
      %s88 = sshll.u32 [#allocation11], 4
      %s89 = int_to_ptr.vmem [resolvable:$true] %s88
      %94 = dma.hbm_to_vmem [thread:$0]  %s7, 4096, %s89, [#allocation12], 128, 128, 8
    $region33: #{tpu_custom_call.1} parent=1 // pred_fallthru
      _
    // Predicated region
    $region34: #{tpu_custom_call.1} parent=1 // pred_check
      _
    $region35: #{tpu_custom_call.1} parent=1 // pred_check_branch
      %96 = sbr.rel (0) target = $region37
    $region36: #{tpu_custom_call.1} parent=1 // pred_region
      _
    $region37: #{tpu_custom_call.1} parent=1 // pred_fallthru
      _
    // Predicated region
    $region38: #{tpu_custom_call.1} parent=1 // pred_check
      _
    $region39: #{tpu_custom_call.1} parent=1 // pred_check_branch
      %98 = sbr.rel (0) target = $region41
    $region40: #{tpu_custom_call.1} parent=1 // pred_region
      %99 = dma.done [#allocation3], 512
    $region41: #{tpu_custom_call.1} parent=1 // pred_fallthru
      _
    // Predicated region
    $region42: #{tpu_custom_call.1} parent=1 // pred_check
      _
    $region43: #{tpu_custom_call.1} parent=1 // pred_check_branch
      %101 = sbr.rel (0) target = $region45
    $region44: #{tpu_custom_call.1} parent=1 // pred_region
      %102 = dma.done [#allocation6], 1024
    $region45: #{tpu_custom_call.1} parent=1 // pred_fallthru
      _
    // Predicated region
    $region46: #{tpu_custom_call.1} parent=1 // pred_check
      _
    $region47: #{tpu_custom_call.1} parent=1 // pred_check_branch
      %104 = sbr.rel (0) target = $region49
    $region48: #{tpu_custom_call.1} parent=1 // pred_region
      %105 = dma.done [#allocation6], 8192
    $region49: #{tpu_custom_call.1} parent=1 // pred_fallthru
      _
    // Predicated region
    $region50: #{tpu_custom_call.1} parent=1 // pred_check
      _
    $region51: #{tpu_custom_call.1} parent=1 // pred_check_branch
      %107 = sbr.rel (0) target = $region53
    $region52: #{tpu_custom_call.1} parent=1 // pred_region
      %108 = dma.done [#allocation9], 4096
    $region53: #{tpu_custom_call.1} parent=1 // pred_fallthru
      _
    // Predicated region
    $region54: #{tpu_custom_call.1} parent=1 // pred_check
      _
    $region55: #{tpu_custom_call.1} parent=1 // pred_check_branch
      %110 = sbr.rel (0) target = $region57
    $region56: #{tpu_custom_call.1} parent=1 // pred_region
      %111 = dma.done [#allocation9], 8192
    $region57: #{tpu_custom_call.1} parent=1 // pred_fallthru
      _
    // Predicated region
    $region58: #{tpu_custom_call.1} parent=1 // pred_check
      _
    $region59: #{tpu_custom_call.1} parent=1 // pred_check_branch
      %113 = sbr.rel (0) target = $region61
    $region60: #{tpu_custom_call.1} parent=1 // pred_region
      %114 = dma.done [#allocation12], 4096
    $region61: #{tpu_custom_call.1} parent=1 // pred_fallthru
      _
    %v115 = vld [vmem:[#allocation2] sm:$0xff]
    %v116 = vld [vmem:[#allocation2 + $0x8] sm:$0xff]
    %v117 = vld [vmem:[#allocation2 + $0x10] sm:$0xff]
    %v118 = vld [vmem:[#allocation2 + $0x18] sm:$0xff]
    %v119 = vpack.c.bf16 %v117, %v115
    %v120 = vpack.c.bf16 %v118, %v116
    %v121 = vld [vmem:[#allocation5] sm:$0xff]
    %v122 = vld [vmem:[#allocation5 + $0x8] sm:$0xff]
    %v123 = vld [vmem:[#allocation5 + $0x10] sm:$0xff]
    %v124 = vld [vmem:[#allocation5 + $0x18] sm:$0xff]
    %v125 = vld [vmem:[#allocation5 + $0x20] sm:$0xff]
    %v126 = vld [vmem:[#allocation5 + $0x28] sm:$0xff]
    %v127 = vld [vmem:[#allocation5 + $0x30] sm:$0xff]
    %v128 = vld [vmem:[#allocation5 + $0x38] sm:$0xff]
    %v129 = vpack.c.bf16 %v125, %v121
    %v130 = vpack.c.bf16 %v126, %v122
    %v131 = vpack.c.bf16 %v127, %v123
    %v132 = vpack.c.bf16 %v128, %v124
    %v133 = vld [vmem:[#allocation7] sm:$0xff]
    %v134 = vld [vmem:[#allocation7 + $0x8] sm:$0xff]
    %v135 = vld [vmem:[#allocation7 + $0x10] sm:$0xff]
    %v136 = vld [vmem:[#allocation7 + $0x18] sm:$0xff]
    %v137 = vld [vmem:[#allocation7 + $0x20] sm:$0xff]
    %v138 = vld [vmem:[#allocation7 + $0x28] sm:$0xff]
    %v139 = vld [vmem:[#allocation7 + $0x30] sm:$0xff]
    %v140 = vld [vmem:[#allocation7 + $0x38] sm:$0xff]
    %v141 = vld [vmem:[#allocation7 + $0x40] sm:$0xff]
    %v142 = vld [vmem:[#allocation7 + $0x48] sm:$0xff]
    %v143 = vld [vmem:[#allocation7 + $0x50] sm:$0xff]
    %v144 = vld [vmem:[#allocation7 + $0x58] sm:$0xff]
    %v145 = vld [vmem:[#allocation7 + $0x60] sm:$0xff]
    %v146 = vld [vmem:[#allocation7 + $0x68] sm:$0xff]
    %v147 = vld [vmem:[#allocation7 + $0x70] sm:$0xff]
    %v148 = vld [vmem:[#allocation7 + $0x78] sm:$0xff]
    %v149 = vld [vmem:[#allocation7 + $0x80] sm:$0xff]
    %v150 = vld [vmem:[#allocation7 + $0x88] sm:$0xff]
    %v151 = vld [vmem:[#allocation7 + $0x90] sm:$0xff]
    %v152 = vld [vmem:[#allocation7 + $0x98] sm:$0xff]
    %v153 = vld [vmem:[#allocation7 + $0xa0] sm:$0xff]
    %v154 = vld [vmem:[#allocation7 + $0xa8] sm:$0xff]
    %v155 = vld [vmem:[#allocation7 + $0xb0] sm:$0xff]
    %v156 = vld [vmem:[#allocation7 + $0xb8] sm:$0xff]
    %v157 = vld [vmem:[#allocation7 + $0xc0] sm:$0xff]
    %v158 = vld [vmem:[#allocation7 + $0xc8] sm:$0xff]
    %v159 = vld [vmem:[#allocation7 + $0xd0] sm:$0xff]
    %v160 = vld [vmem:[#allocation7 + $0xd8] sm:$0xff]
    %v161 = vld [vmem:[#allocation7 + $0xe0] sm:$0xff]
    %v162 = vld [vmem:[#allocation7 + $0xe8] sm:$0xff]
    %v163 = vld [vmem:[#allocation7 + $0xf0] sm:$0xff]
    %v164 = vld [vmem:[#allocation7 + $0xf8] sm:$0xff]
    %v165 = vld [vmem:[#allocation7 + $0x100] sm:$0xff]
    %v166 = vld [vmem:[#allocation7 + $0x108] sm:$0xff]
    %v167 = vld [vmem:[#allocation7 + $0x110] sm:$0xff]
    %v168 = vld [vmem:[#allocation7 + $0x118] sm:$0xff]
    %v169 = vld [vmem:[#allocation7 + $0x120] sm:$0xff]
    %v170 = vld [vmem:[#allocation7 + $0x128] sm:$0xff]
    %v171 = vld [vmem:[#allocation7 + $0x130] sm:$0xff]
    %v172 = vld [vmem:[#allocation7 + $0x138] sm:$0xff]
    %v173 = vld [vmem:[#allocation7 + $0x140] sm:$0xff]
    %v174 = vld [vmem:[#allocation7 + $0x148] sm:$0xff]
    %v175 = vld [vmem:[#allocation7 + $0x150] sm:$0xff]
    %v176 = vld [vmem:[#allocation7 + $0x158] sm:$0xff]
    %v177 = vld [vmem:[#allocation7 + $0x160] sm:$0xff]
    %v178 = vld [vmem:[#allocation7 + $0x168] sm:$0xff]
    %v179 = vld [vmem:[#allocation7 + $0x170] sm:$0xff]
    %v180 = vld [vmem:[#allocation7 + $0x178] sm:$0xff]
    %v181 = vld [vmem:[#allocation7 + $0x180] sm:$0xff]
    %v182 = vld [vmem:[#allocation7 + $0x188] sm:$0xff]
    %v183 = vld [vmem:[#allocation7 + $0x190] sm:$0xff]
    %v184 = vld [vmem:[#allocation7 + $0x198] sm:$0xff]
    %v185 = vld [vmem:[#allocation7 + $0x1a0] sm:$0xff]
    %v186 = vld [vmem:[#allocation7 + $0x1a8] sm:$0xff]
    %v187 = vld [vmem:[#allocation7 + $0x1b0] sm:$0xff]
    %v188 = vld [vmem:[#allocation7 + $0x1b8] sm:$0xff]
    %v189 = vld [vmem:[#allocation7 + $0x1c0] sm:$0xff]
    %v190 = vld [vmem:[#allocation7 + $0x1c8] sm:$0xff]
    %v191 = vld [vmem:[#allocation7 + $0x1d0] sm:$0xff]
    %v192 = vld [vmem:[#allocation7 + $0x1d8] sm:$0xff]
    %v193 = vld [vmem:[#allocation7 + $0x1e0] sm:$0xff]
    %v194 = vld [vmem:[#allocation7 + $0x1e8] sm:$0xff]
    %v195 = vld [vmem:[#allocation7 + $0x1f0] sm:$0xff]
    %v196 = vld [vmem:[#allocation7 + $0x1f8] sm:$0xff]
    %v197 = vld [vmem:[%s3] sm:$0x3]
    %v199 = vlaneseq
    %v200 = vshrl.u32 %v199, 7
    %v201 = vsub.s32 0, %v200
    %v202 = vrot.slane %v197, %v201
    %v203 = vlaneseq
    %v204 = vshrl.u32 %v203, 7
    %v205 = vsub.s32 1, %v204
    %v206 = vrot.slane %v197, %v205
    %v273 = vunpack.c.l.b16 %v133
    %v274 = vunpack.c.h.b16 %v133
    %v275 = vunpack.c.l.b16 %v134
    %v276 = vunpack.c.h.b16 %v134
    %v277 = vunpack.c.l.b16 %v135
    %v278 = vunpack.c.h.b16 %v135
    %v279 = vunpack.c.l.b16 %v136
    %v280 = vunpack.c.h.b16 %v136
    %v281 = vunpack.c.l.b16 %v137
    %v282 = vunpack.c.h.b16 %v137
    %v283 = vunpack.c.l.b16 %v138
    %v284 = vunpack.c.h.b16 %v138
    %v285 = vunpack.c.l.b16 %v139
    %v286 = vunpack.c.h.b16 %v139
    %v287 = vunpack.c.l.b16 %v140
    %v288 = vunpack.c.h.b16 %v140
    %v289 = vunpack.c.l.b16 %v141
    %v290 = vunpack.c.h.b16 %v141
    %v291 = vunpack.c.l.b16 %v142
    %v292 = vunpack.c.h.b16 %v142
    %v293 = vunpack.c.l.b16 %v143
    %v294 = vunpack.c.h.b16 %v143
    %v295 = vunpack.c.l.b16 %v144
    %v296 = vunpack.c.h.b16 %v144
    %v297 = vunpack.c.l.b16 %v145
    %v298 = vunpack.c.h.b16 %v145
    %v299 = vunpack.c.l.b16 %v146
    %v300 = vunpack.c.h.b16 %v146
    %v301 = vunpack.c.l.b16 %v147
    %v302 = vunpack.c.h.b16 %v147
    %v303 = vunpack.c.l.b16 %v148
    %v304 = vunpack.c.h.b16 %v148
    %v305 = vunpack.c.l.b16 %v149
    %v306 = vunpack.c.h.b16 %v149
    %v307 = vunpack.c.l.b16 %v150
    %v308 = vunpack.c.h.b16 %v150
    %v309 = vunpack.c.l.b16 %v151
    %v310 = vunpack.c.h.b16 %v151
    %v311 = vunpack.c.l.b16 %v152
    %v312 = vunpack.c.h.b16 %v152
    %v313 = vunpack.c.l.b16 %v153
    %v314 = vunpack.c.h.b16 %v153
    %v315 = vunpack.c.l.b16 %v154
    %v316 = vunpack.c.h.b16 %v154
    %v317 = vunpack.c.l.b16 %v155
    %v318 = vunpack.c.h.b16 %v155
    %v319 = vunpack.c.l.b16 %v156
    %v320 = vunpack.c.h.b16 %v156
    %v321 = vunpack.c.l.b16 %v157
    %v322 = vunpack.c.h.b16 %v157
    %v323 = vunpack.c.l.b16 %v158
    %v324 = vunpack.c.h.b16 %v158
    %v325 = vunpack.c.l.b16 %v159
    %v326 = vunpack.c.h.b16 %v159
    %v327 = vunpack.c.l.b16 %v160
    %v328 = vunpack.c.h.b16 %v160
    %v329 = vunpack.c.l.b16 %v161
    %v330 = vunpack.c.h.b16 %v161
    %v331 = vunpack.c.l.b16 %v162
    %v332 = vunpack.c.h.b16 %v162
    %v333 = vunpack.c.l.b16 %v163
    %v334 = vunpack.c.h.b16 %v163
    %v335 = vunpack.c.l.b16 %v164
    %v336 = vunpack.c.h.b16 %v164
    %v337 = vunpack.c.l.b16 %v165
    %v338 = vunpack.c.h.b16 %v165
    %v339 = vunpack.c.l.b16 %v166
    %v340 = vunpack.c.h.b16 %v166
    %v341 = vunpack.c.l.b16 %v167
    %v342 = vunpack.c.h.b16 %v167
    %v343 = vunpack.c.l.b16 %v168
    %v344 = vunpack.c.h.b16 %v168
    %v345 = vunpack.c.l.b16 %v169
    %v346 = vunpack.c.h.b16 %v169
    %v347 = vunpack.c.l.b16 %v170
    %v348 = vunpack.c.h.b16 %v170
    %v349 = vunpack.c.l.b16 %v171
    %v350 = vunpack.c.h.b16 %v171
    %v351 = vunpack.c.l.b16 %v172
    %v352 = vunpack.c.h.b16 %v172
    %v353 = vunpack.c.l.b16 %v173
    %v354 = vunpack.c.h.b16 %v173
    %v355 = vunpack.c.l.b16 %v174
    %v356 = vunpack.c.h.b16 %v174
    %v357 = vunpack.c.l.b16 %v175
    %v358 = vunpack.c.h.b16 %v175
    %v359 = vunpack.c.l.b16 %v176
    %v360 = vunpack.c.h.b16 %v176
    %v361 = vunpack.c.l.b16 %v177
    %v362 = vunpack.c.h.b16 %v177
    %v363 = vunpack.c.l.b16 %v178
    %v364 = vunpack.c.h.b16 %v178
    %v365 = vunpack.c.l.b16 %v179
    %v366 = vunpack.c.h.b16 %v179
    %v367 = vunpack.c.l.b16 %v180
    %v368 = vunpack.c.h.b16 %v180
    %v369 = vunpack.c.l.b16 %v181
    %v370 = vunpack.c.h.b16 %v181
    %v371 = vunpack.c.l.b16 %v182
    %v372 = vunpack.c.h.b16 %v182
    %v373 = vunpack.c.l.b16 %v183
    %v374 = vunpack.c.h.b16 %v183
    %v375 = vunpack.c.l.b16 %v184
    %v376 = vunpack.c.h.b16 %v184
    %v377 = vunpack.c.l.b16 %v185
    %v378 = vunpack.c.h.b16 %v185
    %v379 = vunpack.c.l.b16 %v186
    %v380 = vunpack.c.h.b16 %v186
    %v381 = vunpack.c.l.b16 %v187
    %v382 = vunpack.c.h.b16 %v187
    %v383 = vunpack.c.l.b16 %v188
    %v384 = vunpack.c.h.b16 %v188
    %v385 = vunpack.c.l.b16 %v189
    %v386 = vunpack.c.h.b16 %v189
    %v387 = vunpack.c.l.b16 %v190
    %v388 = vunpack.c.h.b16 %v190
    %v389 = vunpack.c.l.b16 %v191
    %v390 = vunpack.c.h.b16 %v191
    %v391 = vunpack.c.l.b16 %v192
    %v392 = vunpack.c.h.b16 %v192
    %v393 = vunpack.c.l.b16 %v193
    %v394 = vunpack.c.h.b16 %v193
    %v395 = vunpack.c.l.b16 %v194
    %v396 = vunpack.c.h.b16 %v194
    %v397 = vunpack.c.l.b16 %v195
    %v398 = vunpack.c.h.b16 %v195
    %v399 = vunpack.c.l.b16 %v196
    %v400 = vunpack.c.h.b16 %v196
    %v401 = vpack.c.b16 %v275, %v273
    %v402 = vpack.c.b16 %v276, %v274
    %v403 = vpack.c.b16 %v279, %v277
    %v404 = vpack.c.b16 %v280, %v278
    %v405 = vpack.c.b16 %v283, %v281
    %v406 = vpack.c.b16 %v284, %v282
    %v407 = vpack.c.b16 %v287, %v285
    %v408 = vpack.c.b16 %v288, %v286
    %v409 = vpack.c.b16 %v291, %v289
    %v410 = vpack.c.b16 %v292, %v290
    %v411 = vpack.c.b16 %v295, %v293
    %v412 = vpack.c.b16 %v296, %v294
    %v413 = vpack.c.b16 %v299, %v297
    %v414 = vpack.c.b16 %v300, %v298
    %v415 = vpack.c.b16 %v303, %v301
    %v416 = vpack.c.b16 %v304, %v302
    %v417 = vpack.c.b16 %v307, %v305
    %v418 = vpack.c.b16 %v308, %v306
    %v419 = vpack.c.b16 %v311, %v309
    %v420 = vpack.c.b16 %v312, %v310
    %v421 = vpack.c.b16 %v315, %v313
    %v422 = vpack.c.b16 %v316, %v314
    %v423 = vpack.c.b16 %v319, %v317
    %v424 = vpack.c.b16 %v320, %v318
    %v425 = vpack.c.b16 %v323, %v321
    %v426 = vpack.c.b16 %v324, %v322
    %v427 = vpack.c.b16 %v327, %v325
    %v428 = vpack.c.b16 %v328, %v326
    %v429 = vpack.c.b16 %v331, %v329
    %v430 = vpack.c.b16 %v332, %v330
    %v431 = vpack.c.b16 %v335, %v333
    %v432 = vpack.c.b16 %v336, %v334
    %v433 = vpack.c.b16 %v339, %v337
    %v434 = vpack.c.b16 %v340, %v338
    %v435 = vpack.c.b16 %v343, %v341
    %v436 = vpack.c.b16 %v344, %v342
    %v437 = vpack.c.b16 %v347, %v345
    %v438 = vpack.c.b16 %v348, %v346
    %v439 = vpack.c.b16 %v351, %v349
    %v440 = vpack.c.b16 %v352, %v350
    %v441 = vpack.c.b16 %v355, %v353
    %v442 = vpack.c.b16 %v356, %v354
    %v443 = vpack.c.b16 %v359, %v357
    %v444 = vpack.c.b16 %v360, %v358
    %v445 = vpack.c.b16 %v363, %v361
    %v446 = vpack.c.b16 %v364, %v362
    %v447 = vpack.c.b16 %v367, %v365
    %v448 = vpack.c.b16 %v368, %v366
    %v449 = vpack.c.b16 %v371, %v369
    %v450 = vpack.c.b16 %v372, %v370
    %v451 = vpack.c.b16 %v375, %v373
    %v452 = vpack.c.b16 %v376, %v374
    %v453 = vpack.c.b16 %v379, %v377
    %v454 = vpack.c.b16 %v380, %v378
    %v455 = vpack.c.b16 %v383, %v381
    %v456 = vpack.c.b16 %v384, %v382
    %v457 = vpack.c.b16 %v387, %v385
    %v458 = vpack.c.b16 %v388, %v386
    %v459 = vpack.c.b16 %v391, %v389
    %v460 = vpack.c.b16 %v392, %v390
    %v461 = vpack.c.b16 %v395, %v393
    %v462 = vpack.c.b16 %v396, %v394
    %v463 = vpack.c.b16 %v399, %v397
    %v464 = vpack.c.b16 %v400, %v398
    %529 = vmatprep.subr.bf16.mxu0 %v416
    %530 = vmatpush1.bf16.msra.mxu0 %v415
    %531 = vmatprep.subr.bf16.mxu0 %v414
    %532 = vmatpush1.bf16.msra.mxu0 %v413
    %533 = vmatprep.subr.bf16.mxu0 %v412
    %534 = vmatpush1.bf16.msra.mxu0 %v411
    %535 = vmatprep.subr.bf16.mxu0 %v410
    %536 = vmatpush1.bf16.msra.mxu0 %v409
    %537 = vmatprep.subr.bf16.mxu0 %v408
    %538 = vmatpush1.bf16.msra.mxu0 %v407
    %539 = vmatprep.subr.bf16.mxu0 %v406
    %540 = vmatpush1.bf16.msra.mxu0 %v405
    %541 = vmatprep.subr.bf16.mxu0 %v404
    %542 = vmatpush1.bf16.msra.mxu0 %v403
    %543 = vmatprep.subr.bf16.mxu0 %v402
    %544 = vmatpush1.bf16.msra.mxu0 %v401
    %545 = vmatprep.subr.bf16.mxu0 %v432
    %546 = vmatpush2.bf16.msra.mxu0 %v431
    %547 = vmatprep.subr.bf16.mxu0 %v430
    %548 = vmatpush2.bf16.msra.mxu0 %v429
    %549 = vmatprep.subr.bf16.mxu0 %v428
    %550 = vmatpush2.bf16.msra.mxu0 %v427
    %551 = vmatprep.subr.bf16.mxu0 %v426
    %552 = vmatpush2.bf16.msra.mxu0 %v425
    %553 = vmatprep.subr.bf16.mxu0 %v424
    %554 = vmatpush2.bf16.msra.mxu0 %v423
    %555 = vmatprep.subr.bf16.mxu0 %v422
    %556 = vmatpush2.bf16.msra.mxu0 %v421
    %557 = vmatprep.subr.bf16.mxu0 %v420
    %558 = vmatpush2.bf16.msra.mxu0 %v419
    %559 = vmatprep.subr.bf16.mxu0 %v418
    %560 = vmatpush2.bf16.msra.mxu0 %v417
    %561 = vmatprep.mubr.bf16.mxu0 %v130
    %562 = vmatmul.mubr.bf16.gmra.mxu0 %v129
    %v563 = vpop.f32.mrf.mxu0
    %v564 = vadd.f32 %v202, %v563
    %v565 = vpop.f32.mrf.mxu0
    %v566 = vadd.f32 %v206, %v565
    %v567 = vpop.f32.mrf.mxu0
    %v568 = vadd.f32 %v202, %v567
    %v569 = vpop.f32.mrf.mxu0
    %v570 = vadd.f32 %v206, %v569
    %571 = vdwg.mxu0
    %572 = vmatprep.subr.bf16.mxu0 %v448
    %573 = vmatpush1.bf16.msra.mxu0 %v447
    %574 = vmatprep.subr.bf16.mxu0 %v446
    %575 = vmatpush1.bf16.msra.mxu0 %v445
    %576 = vmatprep.subr.bf16.mxu0 %v444
    %577 = vmatpush1.bf16.msra.mxu0 %v443
    %578 = vmatprep.subr.bf16.mxu0 %v442
    %579 = vmatpush1.bf16.msra.mxu0 %v441
    %580 = vmatprep.subr.bf16.mxu0 %v440
    %581 = vmatpush1.bf16.msra.mxu0 %v439
    %582 = vmatprep.subr.bf16.mxu0 %v438
    %583 = vmatpush1.bf16.msra.mxu0 %v437
    %584 = vmatprep.subr.bf16.mxu0 %v436
    %585 = vmatpush1.bf16.msra.mxu0 %v435
    %586 = vmatprep.subr.bf16.mxu0 %v434
    %587 = vmatpush1.bf16.msra.mxu0 %v433
    %588 = vmatprep.subr.bf16.mxu0 %v464
    %589 = vmatpush2.bf16.msra.mxu0 %v463
    %590 = vmatprep.subr.bf16.mxu0 %v462
    %591 = vmatpush2.bf16.msra.mxu0 %v461
    %592 = vmatprep.subr.bf16.mxu0 %v460
    %593 = vmatpush2.bf16.msra.mxu0 %v459
    %594 = vmatprep.subr.bf16.mxu0 %v458
    %595 = vmatpush2.bf16.msra.mxu0 %v457
    %596 = vmatprep.subr.bf16.mxu0 %v456
    %597 = vmatpush2.bf16.msra.mxu0 %v455
    %598 = vmatprep.subr.bf16.mxu0 %v454
    %599 = vmatpush2.bf16.msra.mxu0 %v453
    %600 = vmatprep.subr.bf16.mxu0 %v452
    %601 = vmatpush2.bf16.msra.mxu0 %v451
    %602 = vmatprep.subr.bf16.mxu0 %v450
    %603 = vmatpush2.bf16.msra.mxu0 %v449
    %604 = vmatprep.mubr.bf16.mxu0 %v132
    %605 = vmatmul.mubr.bf16.gmra.mxu0 %v131
    %v606 = vpop.f32.mrf.mxu0
    %v607 = vadd.f32 %v564, %v606
    %v608 = vpop.f32.mrf.mxu0
    %v609 = vadd.f32 %v566, %v608
    %v610 = vpop.f32.mrf.mxu0
    %v611 = vadd.f32 %v568, %v610
    %v612 = vpop.f32.mrf.mxu0
    %v613 = vadd.f32 %v570, %v612
    %614 = vdwg.mxu0
    %v615 = vld [vmem:[#allocation8] sm:$0xff]
    %v616 = vld [vmem:[#allocation8 + $0x8] sm:$0xff]
    %v617 = vld [vmem:[#allocation8 + $0x10] sm:$0xff]
    %v618 = vld [vmem:[#allocation8 + $0x18] sm:$0xff]
    %v619 = vld [vmem:[#allocation8 + $0x20] sm:$0xff]
    %v620 = vld [vmem:[#allocation8 + $0x28] sm:$0xff]
    %v621 = vld [vmem:[#allocation8 + $0x30] sm:$0xff]
    %v622 = vld [vmem:[#allocation8 + $0x38] sm:$0xff]
    %v623 = vld [vmem:[#allocation8 + $0x40] sm:$0xff]
    %v624 = vld [vmem:[#allocation8 + $0x48] sm:$0xff]
    %v625 = vld [vmem:[#allocation8 + $0x50] sm:$0xff]
    %v626 = vld [vmem:[#allocation8 + $0x58] sm:$0xff]
    %v627 = vld [vmem:[#allocation8 + $0x60] sm:$0xff]
    %v628 = vld [vmem:[#allocation8 + $0x68] sm:$0xff]
    %v629 = vld [vmem:[#allocation8 + $0x70] sm:$0xff]
    %v630 = vld [vmem:[#allocation8 + $0x78] sm:$0xff]
    %v631 = vld [vmem:[#allocation8 + $0x80] sm:$0xff]
    %v632 = vld [vmem:[#allocation8 + $0x88] sm:$0xff]
    %v633 = vld [vmem:[#allocation8 + $0x90] sm:$0xff]
    %v634 = vld [vmem:[#allocation8 + $0x98] sm:$0xff]
    %v635 = vld [vmem:[#allocation8 + $0xa0] sm:$0xff]
    %v636 = vld [vmem:[#allocation8 + $0xa8] sm:$0xff]
    %v637 = vld [vmem:[#allocation8 + $0xb0] sm:$0xff]
    %v638 = vld [vmem:[#allocation8 + $0xb8] sm:$0xff]
    %v639 = vld [vmem:[#allocation8 + $0xc0] sm:$0xff]
    %v640 = vld [vmem:[#allocation8 + $0xc8] sm:$0xff]
    %v641 = vld [vmem:[#allocation8 + $0xd0] sm:$0xff]
    %v642 = vld [vmem:[#allocation8 + $0xd8] sm:$0xff]
    %v643 = vld [vmem:[#allocation8 + $0xe0] sm:$0xff]
    %v644 = vld [vmem:[#allocation8 + $0xe8] sm:$0xff]
    %v645 = vld [vmem:[#allocation8 + $0xf0] sm:$0xff]
    %v646 = vld [vmem:[#allocation8 + $0xf8] sm:$0xff]
    %v647 = vld [vmem:[#allocation10] sm:$0xff]
    %v648 = vld [vmem:[#allocation10 + $0x8] sm:$0xff]
    %v649 = vld [vmem:[#allocation10 + $0x10] sm:$0xff]
    %v650 = vld [vmem:[#allocation10 + $0x18] sm:$0xff]
    %v651 = vld [vmem:[#allocation10 + $0x20] sm:$0xff]
    %v652 = vld [vmem:[#allocation10 + $0x28] sm:$0xff]
    %v653 = vld [vmem:[#allocation10 + $0x30] sm:$0xff]
    %v654 = vld [vmem:[#allocation10 + $0x38] sm:$0xff]
    %v655 = vld [vmem:[#allocation10 + $0x40] sm:$0xff]
    %v656 = vld [vmem:[#allocation10 + $0x48] sm:$0xff]
    %v657 = vld [vmem:[#allocation10 + $0x50] sm:$0xff]
    %v658 = vld [vmem:[#allocation10 + $0x58] sm:$0xff]
    %v659 = vld [vmem:[#allocation10 + $0x60] sm:$0xff]
    %v660 = vld [vmem:[#allocation10 + $0x68] sm:$0xff]
    %v661 = vld [vmem:[#allocation10 + $0x70] sm:$0xff]
    %v662 = vld [vmem:[#allocation10 + $0x78] sm:$0xff]
    %v663 = vld [vmem:[#allocation10 + $0x80] sm:$0xff]
    %v664 = vld [vmem:[#allocation10 + $0x88] sm:$0xff]
    %v665 = vld [vmem:[#allocation10 + $0x90] sm:$0xff]
    %v666 = vld [vmem:[#allocation10 + $0x98] sm:$0xff]
    %v667 = vld [vmem:[#allocation10 + $0xa0] sm:$0xff]
    %v668 = vld [vmem:[#allocation10 + $0xa8] sm:$0xff]
    %v669 = vld [vmem:[#allocation10 + $0xb0] sm:$0xff]
    %v670 = vld [vmem:[#allocation10 + $0xb8] sm:$0xff]
    %v671 = vld [vmem:[#allocation10 + $0xc0] sm:$0xff]
    %v672 = vld [vmem:[#allocation10 + $0xc8] sm:$0xff]
    %v673 = vld [vmem:[#allocation10 + $0xd0] sm:$0xff]
    %v674 = vld [vmem:[#allocation10 + $0xd8] sm:$0xff]
    %v675 = vld [vmem:[#allocation10 + $0xe0] sm:$0xff]
    %v676 = vld [vmem:[#allocation10 + $0xe8] sm:$0xff]
    %v677 = vld [vmem:[#allocation10 + $0xf0] sm:$0xff]
    %v678 = vld [vmem:[#allocation10 + $0xf8] sm:$0xff]
    %v679 = vld [vmem:[#allocation10 + $0x100] sm:$0xff]
    %v680 = vld [vmem:[#allocation10 + $0x108] sm:$0xff]
    %v681 = vld [vmem:[#allocation10 + $0x110] sm:$0xff]
    %v682 = vld [vmem:[#allocation10 + $0x118] sm:$0xff]
    %v683 = vld [vmem:[#allocation10 + $0x120] sm:$0xff]
    %v684 = vld [vmem:[#allocation10 + $0x128] sm:$0xff]
    %v685 = vld [vmem:[#allocation10 + $0x130] sm:$0xff]
    %v686 = vld [vmem:[#allocation10 + $0x138] sm:$0xff]
    %v687 = vld [vmem:[#allocation10 + $0x140] sm:$0xff]
    %v688 = vld [vmem:[#allocation10 + $0x148] sm:$0xff]
    %v689 = vld [vmem:[#allocation10 + $0x150] sm:$0xff]
    %v690 = vld [vmem:[#allocation10 + $0x158] sm:$0xff]
    %v691 = vld [vmem:[#allocation10 + $0x160] sm:$0xff]
    %v692 = vld [vmem:[#allocation10 + $0x168] sm:$0xff]
    %v693 = vld [vmem:[#allocation10 + $0x170] sm:$0xff]
    %v694 = vld [vmem:[#allocation10 + $0x178] sm:$0xff]
    %v695 = vld [vmem:[#allocation10 + $0x180] sm:$0xff]
    %v696 = vld [vmem:[#allocation10 + $0x188] sm:$0xff]
    %v697 = vld [vmem:[#allocation10 + $0x190] sm:$0xff]
    %v698 = vld [vmem:[#allocation10 + $0x198] sm:$0xff]
    %v699 = vld [vmem:[#allocation10 + $0x1a0] sm:$0xff]
    %v700 = vld [vmem:[#allocation10 + $0x1a8] sm:$0xff]
    %v701 = vld [vmem:[#allocation10 + $0x1b0] sm:$0xff]
    %v702 = vld [vmem:[#allocation10 + $0x1b8] sm:$0xff]
    %v703 = vld [vmem:[#allocation10 + $0x1c0] sm:$0xff]
    %v704 = vld [vmem:[#allocation10 + $0x1c8] sm:$0xff]
    %v705 = vld [vmem:[#allocation10 + $0x1d0] sm:$0xff]
    %v706 = vld [vmem:[#allocation10 + $0x1d8] sm:$0xff]
    %v707 = vld [vmem:[#allocation10 + $0x1e0] sm:$0xff]
    %v708 = vld [vmem:[#allocation10 + $0x1e8] sm:$0xff]
    %v709 = vld [vmem:[#allocation10 + $0x1f0] sm:$0xff]
    %v710 = vld [vmem:[#allocation10 + $0x1f8] sm:$0xff]
    %v775 = vunpack.c.l.b16 %v647
    %v776 = vunpack.c.h.b16 %v647
    %v777 = vunpack.c.l.b16 %v648
    %v778 = vunpack.c.h.b16 %v648
    %v779 = vunpack.c.l.b16 %v649
    %v780 = vunpack.c.h.b16 %v649
    %v781 = vunpack.c.l.b16 %v650
    %v782 = vunpack.c.h.b16 %v650
    %v783 = vunpack.c.l.b16 %v651
    %v784 = vunpack.c.h.b16 %v651
    %v785 = vunpack.c.l.b16 %v652
    %v786 = vunpack.c.h.b16 %v652
    %v787 = vunpack.c.l.b16 %v653
    %v788 = vunpack.c.h.b16 %v653
    %v789 = vunpack.c.l.b16 %v654
    %v790 = vunpack.c.h.b16 %v654
    %v791 = vunpack.c.l.b16 %v655
    %v792 = vunpack.c.h.b16 %v655
    %v793 = vunpack.c.l.b16 %v656
    %v794 = vunpack.c.h.b16 %v656
    %v795 = vunpack.c.l.b16 %v657
    %v796 = vunpack.c.h.b16 %v657
    %v797 = vunpack.c.l.b16 %v658
    %v798 = vunpack.c.h.b16 %v658
    %v799 = vunpack.c.l.b16 %v659
    %v800 = vunpack.c.h.b16 %v659
    %v801 = vunpack.c.l.b16 %v660
    %v802 = vunpack.c.h.b16 %v660
    %v803 = vunpack.c.l.b16 %v661
    %v804 = vunpack.c.h.b16 %v661
    %v805 = vunpack.c.l.b16 %v662
    %v806 = vunpack.c.h.b16 %v662
    %v807 = vunpack.c.l.b16 %v663
    %v808 = vunpack.c.h.b16 %v663
    %v809 = vunpack.c.l.b16 %v664
    %v810 = vunpack.c.h.b16 %v664
    %v811 = vunpack.c.l.b16 %v665
    %v812 = vunpack.c.h.b16 %v665
    %v813 = vunpack.c.l.b16 %v666
    %v814 = vunpack.c.h.b16 %v666
    %v815 = vunpack.c.l.b16 %v667
    %v816 = vunpack.c.h.b16 %v667
    %v817 = vunpack.c.l.b16 %v668
    %v818 = vunpack.c.h.b16 %v668
    %v819 = vunpack.c.l.b16 %v669
    %v820 = vunpack.c.h.b16 %v669
    %v821 = vunpack.c.l.b16 %v670
    %v822 = vunpack.c.h.b16 %v670
    %v823 = vunpack.c.l.b16 %v671
    %v824 = vunpack.c.h.b16 %v671
    %v825 = vunpack.c.l.b16 %v672
    %v826 = vunpack.c.h.b16 %v672
    %v827 = vunpack.c.l.b16 %v673
    %v828 = vunpack.c.h.b16 %v673
    %v829 = vunpack.c.l.b16 %v674
    %v830 = vunpack.c.h.b16 %v674
    %v831 = vunpack.c.l.b16 %v675
    %v832 = vunpack.c.h.b16 %v675
    %v833 = vunpack.c.l.b16 %v676
    %v834 = vunpack.c.h.b16 %v676
    %v835 = vunpack.c.l.b16 %v677
    %v836 = vunpack.c.h.b16 %v677
    %v837 = vunpack.c.l.b16 %v678
    %v838 = vunpack.c.h.b16 %v678
    %v839 = vunpack.c.l.b16 %v679
    %v840 = vunpack.c.h.b16 %v679
    %v841 = vunpack.c.l.b16 %v680
    %v842 = vunpack.c.h.b16 %v680
    %v843 = vunpack.c.l.b16 %v681
    %v844 = vunpack.c.h.b16 %v681
    %v845 = vunpack.c.l.b16 %v682
    %v846 = vunpack.c.h.b16 %v682
    %v847 = vunpack.c.l.b16 %v683
    %v848 = vunpack.c.h.b16 %v683
    %v849 = vunpack.c.l.b16 %v684
    %v850 = vunpack.c.h.b16 %v684
    %v851 = vunpack.c.l.b16 %v685
    %v852 = vunpack.c.h.b16 %v685
    %v853 = vunpack.c.l.b16 %v686
    %v854 = vunpack.c.h.b16 %v686
    %v855 = vunpack.c.l.b16 %v687
    %v856 = vunpack.c.h.b16 %v687
    %v857 = vunpack.c.l.b16 %v688
    %v858 = vunpack.c.h.b16 %v688
    %v859 = vunpack.c.l.b16 %v689
    %v860 = vunpack.c.h.b16 %v689
    %v861 = vunpack.c.l.b16 %v690
    %v862 = vunpack.c.h.b16 %v690
    %v863 = vunpack.c.l.b16 %v691
    %v864 = vunpack.c.h.b16 %v691
    %v865 = vunpack.c.l.b16 %v692
    %v866 = vunpack.c.h.b16 %v692
    %v867 = vunpack.c.l.b16 %v693
    %v868 = vunpack.c.h.b16 %v693
    %v869 = vunpack.c.l.b16 %v694
    %v870 = vunpack.c.h.b16 %v694
    %v871 = vunpack.c.l.b16 %v695
    %v872 = vunpack.c.h.b16 %v695
    %v873 = vunpack.c.l.b16 %v696
    %v874 = vunpack.c.h.b16 %v696
    %v875 = vunpack.c.l.b16 %v697
    %v876 = vunpack.c.h.b16 %v697
    %v877 = vunpack.c.l.b16 %v698
    %v878 = vunpack.c.h.b16 %v698
    %v879 = vunpack.c.l.b16 %v699
    %v880 = vunpack.c.h.b16 %v699
    %v881 = vunpack.c.l.b16 %v700
    %v882 = vunpack.c.h.b16 %v700
    %v883 = vunpack.c.l.b16 %v701
    %v884 = vunpack.c.h.b16 %v701
    %v885 = vunpack.c.l.b16 %v702
    %v886 = vunpack.c.h.b16 %v702
    %v887 = vunpack.c.l.b16 %v703
    %v888 = vunpack.c.h.b16 %v703
    %v889 = vunpack.c.l.b16 %v704
    %v890 = vunpack.c.h.b16 %v704
    %v891 = vunpack.c.l.b16 %v705
    %v892 = vunpack.c.h.b16 %v705
    %v893 = vunpack.c.l.b16 %v706
    %v894 = vunpack.c.h.b16 %v706
    %v895 = vunpack.c.l.b16 %v707
    %v896 = vunpack.c.h.b16 %v707
    %v897 = vunpack.c.l.b16 %v708
    %v898 = vunpack.c.h.b16 %v708
    %v899 = vunpack.c.l.b16 %v709
    %v900 = vunpack.c.h.b16 %v709
    %v901 = vunpack.c.l.b16 %v710
    %v902 = vunpack.c.h.b16 %v710
    %v903 = vpack.c.b16 %v777, %v775
    %v904 = vpack.c.b16 %v778, %v776
    %v905 = vpack.c.b16 %v781, %v779
    %v906 = vpack.c.b16 %v782, %v780
    %v907 = vpack.c.b16 %v785, %v783
    %v908 = vpack.c.b16 %v786, %v784
    %v909 = vpack.c.b16 %v789, %v787
    %v910 = vpack.c.b16 %v790, %v788
    %v911 = vpack.c.b16 %v793, %v791
    %v912 = vpack.c.b16 %v794, %v792
    %v913 = vpack.c.b16 %v797, %v795
    %v914 = vpack.c.b16 %v798, %v796
    %v915 = vpack.c.b16 %v801, %v799
    %v916 = vpack.c.b16 %v802, %v800
    %v917 = vpack.c.b16 %v805, %v803
    %v918 = vpack.c.b16 %v806, %v804
    %v919 = vpack.c.b16 %v809, %v807
    %v920 = vpack.c.b16 %v810, %v808
    %v921 = vpack.c.b16 %v813, %v811
    %v922 = vpack.c.b16 %v814, %v812
    %v923 = vpack.c.b16 %v817, %v815
    %v924 = vpack.c.b16 %v818, %v816
    %v925 = vpack.c.b16 %v821, %v819
    %v926 = vpack.c.b16 %v822, %v820
    %v927 = vpack.c.b16 %v825, %v823
    %v928 = vpack.c.b16 %v826, %v824
    %v929 = vpack.c.b16 %v829, %v827
    %v930 = vpack.c.b16 %v830, %v828
    %v931 = vpack.c.b16 %v833, %v831
    %v932 = vpack.c.b16 %v834, %v832
    %v933 = vpack.c.b16 %v837, %v835
    %v934 = vpack.c.b16 %v838, %v836
    %v935 = vpack.c.b16 %v841, %v839
    %v936 = vpack.c.b16 %v842, %v840
    %v937 = vpack.c.b16 %v845, %v843
    %v938 = vpack.c.b16 %v846, %v844
    %v939 = vpack.c.b16 %v849, %v847
    %v940 = vpack.c.b16 %v850, %v848
    %v941 = vpack.c.b16 %v853, %v851
    %v942 = vpack.c.b16 %v854, %v852
    %v943 = vpack.c.b16 %v857, %v855
    %v944 = vpack.c.b16 %v858, %v856
    %v945 = vpack.c.b16 %v861, %v859
    %v946 = vpack.c.b16 %v862, %v860
    %v947 = vpack.c.b16 %v865, %v863
    %v948 = vpack.c.b16 %v866, %v864
    %v949 = vpack.c.b16 %v869, %v867
    %v950 = vpack.c.b16 %v870, %v868
    %v951 = vpack.c.b16 %v873, %v871
    %v952 = vpack.c.b16 %v874, %v872
    %v953 = vpack.c.b16 %v877, %v875
    %v954 = vpack.c.b16 %v878, %v876
    %v955 = vpack.c.b16 %v881, %v879
    %v956 = vpack.c.b16 %v882, %v880
    %v957 = vpack.c.b16 %v885, %v883
    %v958 = vpack.c.b16 %v886, %v884
    %v959 = vpack.c.b16 %v889, %v887
    %v960 = vpack.c.b16 %v890, %v888
    %v961 = vpack.c.b16 %v893, %v891
    %v962 = vpack.c.b16 %v894, %v892
    %v963 = vpack.c.b16 %v897, %v895
    %v964 = vpack.c.b16 %v898, %v896
    %v965 = vpack.c.b16 %v901, %v899
    %v966 = vpack.c.b16 %v902, %v900
    %1031 = vmatprep.subr.bf16.mxu0 %v918
    %1032 = vmatpush1.bf16.msra.mxu0 %v917
    %1033 = vmatprep.subr.bf16.mxu0 %v916
    %1034 = vmatpush1.bf16.msra.mxu0 %v915
    %1035 = vmatprep.subr.bf16.mxu0 %v914
    %1036 = vmatpush1.bf16.msra.mxu0 %v913
    %1037 = vmatprep.subr.bf16.mxu0 %v912
    %1038 = vmatpush1.bf16.msra.mxu0 %v911
    %1039 = vmatprep.subr.bf16.mxu0 %v910
    %1040 = vmatpush1.bf16.msra.mxu0 %v909
    %1041 = vmatprep.subr.bf16.mxu0 %v908
    %1042 = vmatpush1.bf16.msra.mxu0 %v907
    %1043 = vmatprep.subr.bf16.mxu0 %v906
    %1044 = vmatpush1.bf16.msra.mxu0 %v905
    %1045 = vmatprep.subr.bf16.mxu0 %v904
    %1046 = vmatpush1.bf16.msra.mxu0 %v903
    %1047 = vmatprep.subr.bf16.mxu0 %v934
    %1048 = vmatpush2.bf16.msra.mxu0 %v933
    %1049 = vmatprep.subr.bf16.mxu0 %v932
    %1050 = vmatpush2.bf16.msra.mxu0 %v931
    %1051 = vmatprep.subr.bf16.mxu0 %v930
    %1052 = vmatpush2.bf16.msra.mxu0 %v929
    %1053 = vmatprep.subr.bf16.mxu0 %v928
    %1054 = vmatpush2.bf16.msra.mxu0 %v927
    %1055 = vmatprep.subr.bf16.mxu0 %v926
    %1056 = vmatpush2.bf16.msra.mxu0 %v925
    %1057 = vmatprep.subr.bf16.mxu0 %v924
    %1058 = vmatpush2.bf16.msra.mxu0 %v923
    %1059 = vmatprep.subr.bf16.mxu0 %v922
    %1060 = vmatpush2.bf16.msra.mxu0 %v921
    %1061 = vmatprep.subr.bf16.mxu0 %v920
    %1062 = vmatpush2.bf16.msra.mxu0 %v919
    %1063 = vmatprep.mubr.bf16.mxu0 %v130
    %1064 = vmatmul.mubr.bf16.gmra.mxu0 %v129
    %v1065 = vpop.f32.mrf.mxu0
    %v1066 = vadd.f32 0.0, %v1065
    %v1067 = vpop.f32.mrf.mxu0
    %v1068 = vadd.f32 0.0, %v1067
    %v1069 = vpop.f32.mrf.mxu0
    %v1070 = vadd.f32 0.0, %v1069
    %v1071 = vpop.f32.mrf.mxu0
    %v1072 = vadd.f32 0.0, %v1071
    %1073 = vdwg.mxu0
    %1074 = vmatprep.subr.bf16.mxu0 %v950
    %1075 = vmatpush1.bf16.msra.mxu0 %v949
    %1076 = vmatprep.subr.bf16.mxu0 %v948
    %1077 = vmatpush1.bf16.msra.mxu0 %v947
    %1078 = vmatprep.subr.bf16.mxu0 %v946
    %1079 = vmatpush1.bf16.msra.mxu0 %v945
    %1080 = vmatprep.subr.bf16.mxu0 %v944
    %1081 = vmatpush1.bf16.msra.mxu0 %v943
    %1082 = vmatprep.subr.bf16.mxu0 %v942
    %1083 = vmatpush1.bf16.msra.mxu0 %v941
    %1084 = vmatprep.subr.bf16.mxu0 %v940
    %1085 = vmatpush1.bf16.msra.mxu0 %v939
    %1086 = vmatprep.subr.bf16.mxu0 %v938
    %1087 = vmatpush1.bf16.msra.mxu0 %v937
    %1088 = vmatprep.subr.bf16.mxu0 %v936
    %1089 = vmatpush1.bf16.msra.mxu0 %v935
    %1090 = vmatprep.subr.bf16.mxu0 %v966
    %1091 = vmatpush2.bf16.msra.mxu0 %v965
    %1092 = vmatprep.subr.bf16.mxu0 %v964
    %1093 = vmatpush2.bf16.msra.mxu0 %v963
    %1094 = vmatprep.subr.bf16.mxu0 %v962
    %1095 = vmatpush2.bf16.msra.mxu0 %v961
    %1096 = vmatprep.subr.bf16.mxu0 %v960
    %1097 = vmatpush2.bf16.msra.mxu0 %v959
    %1098 = vmatprep.subr.bf16.mxu0 %v958
    %1099 = vmatpush2.bf16.msra.mxu0 %v957
    %1100 = vmatprep.subr.bf16.mxu0 %v956
    %1101 = vmatpush2.bf16.msra.mxu0 %v955
    %1102 = vmatprep.subr.bf16.mxu0 %v954
    %1103 = vmatpush2.bf16.msra.mxu0 %v953
    %1104 = vmatprep.subr.bf16.mxu0 %v952
    %1105 = vmatpush2.bf16.msra.mxu0 %v951
    %1106 = vmatprep.mubr.bf16.mxu0 %v132
    %1107 = vmatmul.mubr.bf16.gmra.mxu0 %v131
    %v1108 = vpop.f32.mrf.mxu0
    %v1109 = vadd.f32 %v1066, %v1108
    %v1110 = vpop.f32.mrf.mxu0
    %v1111 = vadd.f32 %v1068, %v1110
    %v1112 = vpop.f32.mrf.mxu0
    %v1113 = vadd.f32 %v1070, %v1112
    %v1114 = vpop.f32.mrf.mxu0
    %v1115 = vadd.f32 %v1072, %v1114
    %1116 = vdwg.mxu0
    %v1149 = vunpack.c.l.b16 %v615
    %v1150 = vunpack.c.h.b16 %v615
    %v1151 = vunpack.c.l.b16 %v616
    %v1152 = vunpack.c.h.b16 %v616
    %v1153 = vunpack.c.l.b16 %v617
    %v1154 = vunpack.c.h.b16 %v617
    %v1155 = vunpack.c.l.b16 %v618
    %v1156 = vunpack.c.h.b16 %v618
    %v1157 = vunpack.c.l.b16 %v619
    %v1158 = vunpack.c.h.b16 %v619
    %v1159 = vunpack.c.l.b16 %v620
    %v1160 = vunpack.c.h.b16 %v620
    %v1161 = vunpack.c.l.b16 %v621
    %v1162 = vunpack.c.h.b16 %v621
    %v1163 = vunpack.c.l.b16 %v622
    %v1164 = vunpack.c.h.b16 %v622
    %v1165 = vunpack.c.l.b16 %v623
    %v1166 = vunpack.c.h.b16 %v623
    %v1167 = vunpack.c.l.b16 %v624
    %v1168 = vunpack.c.h.b16 %v624
    %v1169 = vunpack.c.l.b16 %v625
    %v1170 = vunpack.c.h.b16 %v625
    %v1171 = vunpack.c.l.b16 %v626
    %v1172 = vunpack.c.h.b16 %v626
    %v1173 = vunpack.c.l.b16 %v627
    %v1174 = vunpack.c.h.b16 %v627
    %v1175 = vunpack.c.l.b16 %v628
    %v1176 = vunpack.c.h.b16 %v628
    %v1177 = vunpack.c.l.b16 %v629
    %v1178 = vunpack.c.h.b16 %v629
    %v1179 = vunpack.c.l.b16 %v630
    %v1180 = vunpack.c.h.b16 %v630
    %v1181 = vunpack.c.l.b16 %v631
    %v1182 = vunpack.c.h.b16 %v631
    %v1183 = vunpack.c.l.b16 %v632
    %v1184 = vunpack.c.h.b16 %v632
    %v1185 = vunpack.c.l.b16 %v633
    %v1186 = vunpack.c.h.b16 %v633
    %v1187 = vunpack.c.l.b16 %v634
    %v1188 = vunpack.c.h.b16 %v634
    %v1189 = vunpack.c.l.b16 %v635
    %v1190 = vunpack.c.h.b16 %v635
    %v1191 = vunpack.c.l.b16 %v636
    %v1192 = vunpack.c.h.b16 %v636
    %v1193 = vunpack.c.l.b16 %v637
    %v1194 = vunpack.c.h.b16 %v637
    %v1195 = vunpack.c.l.b16 %v638
    %v1196 = vunpack.c.h.b16 %v638
    %v1197 = vunpack.c.l.b16 %v639
    %v1198 = vunpack.c.h.b16 %v639
    %v1199 = vunpack.c.l.b16 %v640
    %v1200 = vunpack.c.h.b16 %v640
    %v1201 = vunpack.c.l.b16 %v641
    %v1202 = vunpack.c.h.b16 %v641
    %v1203 = vunpack.c.l.b16 %v642
    %v1204 = vunpack.c.h.b16 %v642
    %v1205 = vunpack.c.l.b16 %v643
    %v1206 = vunpack.c.h.b16 %v643
    %v1207 = vunpack.c.l.b16 %v644
    %v1208 = vunpack.c.h.b16 %v644
    %v1209 = vunpack.c.l.b16 %v645
    %v1210 = vunpack.c.h.b16 %v645
    %v1211 = vunpack.c.l.b16 %v646
    %v1212 = vunpack.c.h.b16 %v646
    %v1213 = vpack.c.b16 %v1151, %v1149
    %v1214 = vpack.c.b16 %v1152, %v1150
    %v1215 = vpack.c.b16 %v1155, %v1153
    %v1216 = vpack.c.b16 %v1156, %v1154
    %v1217 = vpack.c.b16 %v1159, %v1157
    %v1218 = vpack.c.b16 %v1160, %v1158
    %v1219 = vpack.c.b16 %v1163, %v1161
    %v1220 = vpack.c.b16 %v1164, %v1162
    %v1221 = vpack.c.b16 %v1167, %v1165
    %v1222 = vpack.c.b16 %v1168, %v1166
    %v1223 = vpack.c.b16 %v1171, %v1169
    %v1224 = vpack.c.b16 %v1172, %v1170
    %v1225 = vpack.c.b16 %v1175, %v1173
    %v1226 = vpack.c.b16 %v1176, %v1174
    %v1227 = vpack.c.b16 %v1179, %v1177
    %v1228 = vpack.c.b16 %v1180, %v1178
    %v1229 = vpack.c.b16 %v1183, %v1181
    %v1230 = vpack.c.b16 %v1184, %v1182
    %v1231 = vpack.c.b16 %v1187, %v1185
    %v1232 = vpack.c.b16 %v1188, %v1186
    %v1233 = vpack.c.b16 %v1191, %v1189
    %v1234 = vpack.c.b16 %v1192, %v1190
    %v1235 = vpack.c.b16 %v1195, %v1193
    %v1236 = vpack.c.b16 %v1196, %v1194
    %v1237 = vpack.c.b16 %v1199, %v1197
    %v1238 = vpack.c.b16 %v1200, %v1198
    %v1239 = vpack.c.b16 %v1203, %v1201
    %v1240 = vpack.c.b16 %v1204, %v1202
    %v1241 = vpack.c.b16 %v1207, %v1205
    %v1242 = vpack.c.b16 %v1208, %v1206
    %v1243 = vpack.c.b16 %v1211, %v1209
    %v1244 = vpack.c.b16 %v1212, %v1210
    %1277 = vmatprep.subr.bf16.mxu0 %v1228
    %1278 = vmatpush1.bf16.msra.mxu0 %v1227
    %1279 = vmatprep.subr.bf16.mxu0 %v1226
    %1280 = vmatpush1.bf16.msra.mxu0 %v1225
    %1281 = vmatprep.subr.bf16.mxu0 %v1224
    %1282 = vmatpush1.bf16.msra.mxu0 %v1223
    %1283 = vmatprep.subr.bf16.mxu0 %v1222
    %1284 = vmatpush1.bf16.msra.mxu0 %v1221
    %1285 = vmatprep.subr.bf16.mxu0 %v1220
    %1286 = vmatpush1.bf16.msra.mxu0 %v1219
    %1287 = vmatprep.subr.bf16.mxu0 %v1218
    %1288 = vmatpush1.bf16.msra.mxu0 %v1217
    %1289 = vmatprep.subr.bf16.mxu0 %v1216
    %1290 = vmatpush1.bf16.msra.mxu0 %v1215
    %1291 = vmatprep.subr.bf16.mxu0 %v1214
    %1292 = vmatpush1.bf16.msra.mxu0 %v1213
    %1293 = vmatprep.subr.bf16.mxu0 %v1244
    %1294 = vmatpush2.bf16.msra.mxu0 %v1243
    %1295 = vmatprep.subr.bf16.mxu0 %v1242
    %1296 = vmatpush2.bf16.msra.mxu0 %v1241
    %1297 = vmatprep.subr.bf16.mxu0 %v1240
    %1298 = vmatpush2.bf16.msra.mxu0 %v1239
    %1299 = vmatprep.subr.bf16.mxu0 %v1238
    %1300 = vmatpush2.bf16.msra.mxu0 %v1237
    %1301 = vmatprep.subr.bf16.mxu0 %v1236
    %1302 = vmatpush2.bf16.msra.mxu0 %v1235
    %1303 = vmatprep.subr.bf16.mxu0 %v1234
    %1304 = vmatpush2.bf16.msra.mxu0 %v1233
    %1305 = vmatprep.subr.bf16.mxu0 %v1232
    %1306 = vmatpush2.bf16.msra.mxu0 %v1231
    %1307 = vmatprep.subr.bf16.mxu0 %v1230
    %1308 = vmatpush2.bf16.msra.mxu0 %v1229
    %1309 = vmatprep.mubr.bf16.mxu0 %v120
    %1310 = vmatmul.mubr.bf16.gmra.mxu0 %v119
    %v1311 = vpop.f32.mrf.mxu0
    %v1312 = vadd.f32 %v1109, %v1311
    %v1313 = vpop.f32.mrf.mxu0
    %v1314 = vadd.f32 %v1111, %v1313
    %v1315 = vpop.f32.mrf.mxu0
    %v1316 = vadd.f32 %v1113, %v1315
    %v1317 = vpop.f32.mrf.mxu0
    %v1318 = vadd.f32 %v1115, %v1317
    %1319 = vdwg.mxu0
    %v1320 = vld [vmem:[%s6] sm:$0x3]
    %v1322 = vlaneseq
    %v1323 = vshrl.u32 %v1322, 7
    %v1324 = vsub.s32 0, %v1323
    %v1325 = vrot.slane %v1320, %v1324
    %v1326 = vlaneseq
    %v1327 = vshrl.u32 %v1326, 7
    %v1328 = vsub.s32 1, %v1327
    %v1329 = vrot.slane %v1320, %v1328
    %v1332 = vadd.f32 %v1312, %v1325
    %v1333 = vadd.f32 %v1314, %v1329
    %v1334 = vadd.f32 %v1316, %v1325
    %v1335 = vadd.f32 %v1318, %v1329
    %v1336 = vmax.f32 %v1332, 0.0
    %v1337 = vmax.f32 %v1333, 0.0
    %v1338 = vmax.f32 %v1334, 0.0
    %v1339 = vmax.f32 %v1335, 0.0
    %v1340 = vpack.c.bf16 %v1338, %v1336
    %v1341 = vpack.c.bf16 %v1339, %v1337
    %v1342 = vld [vmem:[#allocation11] sm:$0xff]
    %v1343 = vld [vmem:[#allocation11 + $0x8] sm:$0xff]
    %v1344 = vld [vmem:[#allocation11 + $0x10] sm:$0xff]
    %v1345 = vld [vmem:[#allocation11 + $0x18] sm:$0xff]
    %v1346 = vld [vmem:[#allocation11 + $0x20] sm:$0xff]
    %v1347 = vld [vmem:[#allocation11 + $0x28] sm:$0xff]
    %v1348 = vld [vmem:[#allocation11 + $0x30] sm:$0xff]
    %v1349 = vld [vmem:[#allocation11 + $0x38] sm:$0xff]
    %v1350 = vld [vmem:[#allocation11 + $0x40] sm:$0xff]
    %v1351 = vld [vmem:[#allocation11 + $0x48] sm:$0xff]
    %v1352 = vld [vmem:[#allocation11 + $0x50] sm:$0xff]
    %v1353 = vld [vmem:[#allocation11 + $0x58] sm:$0xff]
    %v1354 = vld [vmem:[#allocation11 + $0x60] sm:$0xff]
    %v1355 = vld [vmem:[#allocation11 + $0x68] sm:$0xff]
    %v1356 = vld [vmem:[#allocation11 + $0x70] sm:$0xff]
    %v1357 = vld [vmem:[#allocation11 + $0x78] sm:$0xff]
    %v1358 = vld [vmem:[#allocation11 + $0x80] sm:$0xff]
    %v1359 = vld [vmem:[#allocation11 + $0x88] sm:$0xff]
    %v1360 = vld [vmem:[#allocation11 + $0x90] sm:$0xff]
    %v1361 = vld [vmem:[#allocation11 + $0x98] sm:$0xff]
    %v1362 = vld [vmem:[#allocation11 + $0xa0] sm:$0xff]
    %v1363 = vld [vmem:[#allocation11 + $0xa8] sm:$0xff]
    %v1364 = vld [vmem:[#allocation11 + $0xb0] sm:$0xff]
    %v1365 = vld [vmem:[#allocation11 + $0xb8] sm:$0xff]
    %v1366 = vld [vmem:[#allocation11 + $0xc0] sm:$0xff]
    %v1367 = vld [vmem:[#allocation11 + $0xc8] sm:$0xff]
    %v1368 = vld [vmem:[#allocation11 + $0xd0] sm:$0xff]
    %v1369 = vld [vmem:[#allocation11 + $0xd8] sm:$0xff]
    %v1370 = vld [vmem:[#allocation11 + $0xe0] sm:$0xff]
    %v1371 = vld [vmem:[#allocation11 + $0xe8] sm:$0xff]
    %v1372 = vld [vmem:[#allocation11 + $0xf0] sm:$0xff]
    %v1373 = vld [vmem:[#allocation11 + $0xf8] sm:$0xff]
    %v1374 = vld [vmem:[%s8] sm:$0x3]
    %v1376 = vlaneseq
    %v1377 = vshrl.u32 %v1376, 7
    %v1378 = vsub.s32 0, %v1377
    %v1379 = vrot.slane %v1374, %v1378
    %v1380 = vlaneseq
    %v1381 = vshrl.u32 %v1380, 7
    %v1382 = vsub.s32 1, %v1381
    %v1383 = vrot.slane %v1374, %v1382
    %v1418 = vunpack.c.l.b16 %v1342
    %v1419 = vunpack.c.h.b16 %v1342
    %v1420 = vunpack.c.l.b16 %v1343
    %v1421 = vunpack.c.h.b16 %v1343
    %v1422 = vunpack.c.l.b16 %v1344
    %v1423 = vunpack.c.h.b16 %v1344
    %v1424 = vunpack.c.l.b16 %v1345
    %v1425 = vunpack.c.h.b16 %v1345
    %v1426 = vunpack.c.l.b16 %v1346
    %v1427 = vunpack.c.h.b16 %v1346
    %v1428 = vunpack.c.l.b16 %v1347
    %v1429 = vunpack.c.h.b16 %v1347
    %v1430 = vunpack.c.l.b16 %v1348
    %v1431 = vunpack.c.h.b16 %v1348
    %v1432 = vunpack.c.l.b16 %v1349
    %v1433 = vunpack.c.h.b16 %v1349
    %v1434 = vunpack.c.l.b16 %v1350
    %v1435 = vunpack.c.h.b16 %v1350
    %v1436 = vunpack.c.l.b16 %v1351
    %v1437 = vunpack.c.h.b16 %v1351
    %v1438 = vunpack.c.l.b16 %v1352
    %v1439 = vunpack.c.h.b16 %v1352
    %v1440 = vunpack.c.l.b16 %v1353
    %v1441 = vunpack.c.h.b16 %v1353
    %v1442 = vunpack.c.l.b16 %v1354
    %v1443 = vunpack.c.h.b16 %v1354
    %v1444 = vunpack.c.l.b16 %v1355
    %v1445 = vunpack.c.h.b16 %v1355
    %v1446 = vunpack.c.l.b16 %v1356
    %v1447 = vunpack.c.h.b16 %v1356
    %v1448 = vunpack.c.l.b16 %v1357
    %v1449 = vunpack.c.h.b16 %v1357
    %v1450 = vunpack.c.l.b16 %v1358
    %v1451 = vunpack.c.h.b16 %v1358
    %v1452 = vunpack.c.l.b16 %v1359
    %v1453 = vunpack.c.h.b16 %v1359
    %v1454 = vunpack.c.l.b16 %v1360
    %v1455 = vunpack.c.h.b16 %v1360
    %v1456 = vunpack.c.l.b16 %v1361
    %v1457 = vunpack.c.h.b16 %v1361
    %v1458 = vunpack.c.l.b16 %v1362
    %v1459 = vunpack.c.h.b16 %v1362
    %v1460 = vunpack.c.l.b16 %v1363
    %v1461 = vunpack.c.h.b16 %v1363
    %v1462 = vunpack.c.l.b16 %v1364
    %v1463 = vunpack.c.h.b16 %v1364
    %v1464 = vunpack.c.l.b16 %v1365
    %v1465 = vunpack.c.h.b16 %v1365
    %v1466 = vunpack.c.l.b16 %v1366
    %v1467 = vunpack.c.h.b16 %v1366
    %v1468 = vunpack.c.l.b16 %v1367
    %v1469 = vunpack.c.h.b16 %v1367
    %v1470 = vunpack.c.l.b16 %v1368
    %v1471 = vunpack.c.h.b16 %v1368
    %v1472 = vunpack.c.l.b16 %v1369
    %v1473 = vunpack.c.h.b16 %v1369
    %v1474 = vunpack.c.l.b16 %v1370
    %v1475 = vunpack.c.h.b16 %v1370
    %v1476 = vunpack.c.l.b16 %v1371
    %v1477 = vunpack.c.h.b16 %v1371
    %v1478 = vunpack.c.l.b16 %v1372
    %v1479 = vunpack.c.h.b16 %v1372
    %v1480 = vunpack.c.l.b16 %v1373
    %v1481 = vunpack.c.h.b16 %v1373
    %v1482 = vpack.c.b16 %v1420, %v1418
    %v1483 = vpack.c.b16 %v1421, %v1419
    %v1484 = vpack.c.b16 %v1424, %v1422
    %v1485 = vpack.c.b16 %v1425, %v1423
    %v1486 = vpack.c.b16 %v1428, %v1426
    %v1487 = vpack.c.b16 %v1429, %v1427
    %v1488 = vpack.c.b16 %v1432, %v1430
    %v1489 = vpack.c.b16 %v1433, %v1431
    %v1490 = vpack.c.b16 %v1436, %v1434
    %v1491 = vpack.c.b16 %v1437, %v1435
    %v1492 = vpack.c.b16 %v1440, %v1438
    %v1493 = vpack.c.b16 %v1441, %v1439
    %v1494 = vpack.c.b16 %v1444, %v1442
    %v1495 = vpack.c.b16 %v1445, %v1443
    %v1496 = vpack.c.b16 %v1448, %v1446
    %v1497 = vpack.c.b16 %v1449, %v1447
    %v1498 = vpack.c.b16 %v1452, %v1450
    %v1499 = vpack.c.b16 %v1453, %v1451
    %v1500 = vpack.c.b16 %v1456, %v1454
    %v1501 = vpack.c.b16 %v1457, %v1455
    %v1502 = vpack.c.b16 %v1460, %v1458
    %v1503 = vpack.c.b16 %v1461, %v1459
    %v1504 = vpack.c.b16 %v1464, %v1462
    %v1505 = vpack.c.b16 %v1465, %v1463
    %v1506 = vpack.c.b16 %v1468, %v1466
    %v1507 = vpack.c.b16 %v1469, %v1467
    %v1508 = vpack.c.b16 %v1472, %v1470
    %v1509 = vpack.c.b16 %v1473, %v1471
    %v1510 = vpack.c.b16 %v1476, %v1474
    %v1511 = vpack.c.b16 %v1477, %v1475
    %v1512 = vpack.c.b16 %v1480, %v1478
    %v1513 = vpack.c.b16 %v1481, %v1479
    %1546 = vmatprep.subr.bf16.mxu0 %v1497
    %1547 = vmatpush1.bf16.msra.mxu0 %v1496
    %1548 = vmatprep.subr.bf16.mxu0 %v1495
    %1549 = vmatpush1.bf16.msra.mxu0 %v1494
    %1550 = vmatprep.subr.bf16.mxu0 %v1493
    %1551 = vmatpush1.bf16.msra.mxu0 %v1492
    %1552 = vmatprep.subr.bf16.mxu0 %v1491
    %1553 = vmatpush1.bf16.msra.mxu0 %v1490
    %1554 = vmatprep.subr.bf16.mxu0 %v1489
    %1555 = vmatpush1.bf16.msra.mxu0 %v1488
    %1556 = vmatprep.subr.bf16.mxu0 %v1487
    %1557 = vmatpush1.bf16.msra.mxu0 %v1486
    %1558 = vmatprep.subr.bf16.mxu0 %v1485
    %1559 = vmatpush1.bf16.msra.mxu0 %v1484
    %1560 = vmatprep.subr.bf16.mxu0 %v1483
    %1561 = vmatpush1.bf16.msra.mxu0 %v1482
    %1562 = vmatprep.subr.bf16.mxu0 %v1513
    %1563 = vmatpush2.bf16.msra.mxu0 %v1512
    %1564 = vmatprep.subr.bf16.mxu0 %v1511
    %1565 = vmatpush2.bf16.msra.mxu0 %v1510
    %1566 = vmatprep.subr.bf16.mxu0 %v1509
    %1567 = vmatpush2.bf16.msra.mxu0 %v1508
    %1568 = vmatprep.subr.bf16.mxu0 %v1507
    %1569 = vmatpush2.bf16.msra.mxu0 %v1506
    %1570 = vmatprep.subr.bf16.mxu0 %v1505
    %1571 = vmatpush2.bf16.msra.mxu0 %v1504
    %1572 = vmatprep.subr.bf16.mxu0 %v1503
    %1573 = vmatpush2.bf16.msra.mxu0 %v1502
    %1574 = vmatprep.subr.bf16.mxu0 %v1501
    %1575 = vmatpush2.bf16.msra.mxu0 %v1500
    %1576 = vmatprep.subr.bf16.mxu0 %v1499
    %1577 = vmatpush2.bf16.msra.mxu0 %v1498
    %1578 = vmatprep.mubr.bf16.mxu0 %v1341
    %1579 = vmatmul.mubr.bf16.gmra.mxu0 %v1340
    %v1580 = vpop.f32.mrf.mxu0
    %v1581 = vadd.f32 %v1379, %v1580
    %v1582 = vpop.f32.mrf.mxu0
    %v1583 = vadd.f32 %v1383, %v1582
    %v1584 = vpop.f32.mrf.mxu0
    %v1585 = vadd.f32 %v1379, %v1584
    %v1586 = vpop.f32.mrf.mxu0
    %v1587 = vadd.f32 %v1383, %v1586
    %1588 = vdwg.mxu0
    %v1589 = vmax.f32 %v1581, -60.0
    %v1590 = vmax.f32 %v1583, -60.0
    %v1591 = vmax.f32 %v1585, -60.0
    %v1592 = vmax.f32 %v1587, -60.0
    %v1593 = vsub.f32 0.0, %v1589
    %v1594 = vsub.f32 0.0, %v1590
    %v1595 = vsub.f32 0.0, %v1591
    %v1596 = vsub.f32 0.0, %v1592
    %v1597 = vmul.f32 %v1593, 1.442695
    %v1598 = vpow.pop %v1597
    %v1599 = vmul.f32 %v1594, 1.442695
    %v1600 = vpow.pop %v1599
    %v1601 = vmul.f32 %v1595, 1.442695
    %v1602 = vpow.pop %v1601
    %v1603 = vmul.f32 %v1596, 1.442695
    %v1604 = vpow.pop %v1603
    %v1605 = vadd.f32 %v1598, 1.0
    %v1606 = vadd.f32 %v1600, 1.0
    %v1607 = vadd.f32 %v1602, 1.0
    %v1608 = vadd.f32 %v1604, 1.0
    %v1609 = vrcp.pop %v1605
    %v1610 = vrcp.pop %v1606
    %v1611 = vrcp.pop %v1607
    %v1612 = vrcp.pop %v1608
    %v1613 = vsub.f32 %v115, %v607
    %v1614 = vsub.f32 %v116, %v609
    %v1615 = vsub.f32 %v117, %v611
    %v1616 = vsub.f32 %v118, %v613
    %v1617 = vmul.f32 %v1609, %v1613
    %v1618 = vmul.f32 %v1610, %v1614
    %v1619 = vmul.f32 %v1611, %v1615
    %v1620 = vmul.f32 %v1612, %v1616
    %v1621 = vadd.f32 %v607, %v1617
    %v1622 = vadd.f32 %v609, %v1618
    %v1623 = vadd.f32 %v611, %v1619
    %v1624 = vadd.f32 %v613, %v1620
    %1625 = vst [vmem:[#allocation13] sm:$0xff] %v1621
    %1626 = vst [vmem:[#allocation13 + $0x8] sm:$0xff] %v1622
    %1627 = vst [vmem:[#allocation13 + $0x10] sm:$0xff] %v1623
    %1628 = vst [vmem:[#allocation13 + $0x18] sm:$0xff] %v1624
    // Predicated region
    $region62: #{tpu_custom_call.1} parent=1 // pred_check
      _
    $region63: #{tpu_custom_call.1} parent=1 // pred_check_branch
      %1630 = sbr.rel (0) target = $region65
    $region64: #{tpu_custom_call.1} parent=1 // pred_region
      %s1632 = ssub.s32 512, 512
      %1633 = vsyncadd [#allocation4], %s1632
      %s1634 = sshll.u32 [#allocation13], 4
      %s1635 = int_to_ptr.vmem [resolvable:$true] %s1634
      %1640 = dma.vmem_to_hbm [thread:$0]  %s1635, 512, %s9, [#allocation4], 256, 256, 16
    $region65: #{tpu_custom_call.1} parent=1 // pred_fallthru
      _
    // Predicated region
    $region66: #{tpu_custom_call.1} parent=1 // pred_check
      _
    $region67: #{tpu_custom_call.1} parent=1 // pred_check_branch
      %1642 = sbr.rel (0) target = $region69
    $region68: #{tpu_custom_call.1} parent=1 // pred_region
      %1643 = dma.done [#allocation4], 512
    $region69: #{tpu_custom_call.1} parent=1 // pred_fallthru
      _
    %1644 = vsyncpa [#allocation3], 1
    %1645 = vsyncpa [#allocation6], 1
    %1646 = vsyncpa [#allocation9], 1
    %1647 = vsyncpa [#allocation12], 1
    %1648 = vsyncpa [#allocation4], 1

</llo_original>
